<compile_context>
chip_gen: v5e
topology: v5e:2x2
jax: 0.10.0
libtpu: 0.0.40
codegen_flags: <defaults>
</compile_context>

<pallas_src>
import jax
import jax.numpy as jnp
from jax.experimental import pallas as pl
from jax.experimental.pallas import tpu as pltpu


# ---------------------------------------------------------------------------
# Small helpers
# ---------------------------------------------------------------------------
def _round_up(x, m):
    return ((x + m - 1) // m) * m


def _largest_divisor_leq(n, cap):
    for d in range(min(cap, n), 0, -1):
        if n % d == 0:
            return d
    return 1


def _maybe_buffered_spec(block_shape, index_map, buffer_count=1):
    """Single-buffer a resident operand (constant index map): halves its VMEM
    footprint (important for large W_hh on v7x).  Falls back gracefully if
    this Pallas build lacks pipeline_mode / pl.Buffered."""
    try:
        return pl.BlockSpec(block_shape, index_map,
                            pipeline_mode=pl.Buffered(buffer_count))
    except (AttributeError, TypeError):
        return pl.BlockSpec(block_shape, index_map)


# ---------------------------------------------------------------------------
# Tiled matmul + bias:  (N, K) @ (K, M) + (1, M)  ->  (N, M)
# Used for the hoisted LSTM input projections and the final FC layer.
# K is a grid axis (last, "arbitrary") with an f32 VMEM accumulator.
# ---------------------------------------------------------------------------
def _matmul_bias_kernel(x_ref, w_ref, b_ref, o_ref, acc_ref):
    @pl.when(pl.program_id(2) == 0)
    def _():
        acc_ref[...] = jnp.zeros_like(acc_ref)

    acc_ref[...] += jnp.dot(x_ref[...], w_ref[...],
                            preferred_element_type=jnp.float32)

    @pl.when(pl.program_id(2) == pl.num_programs(2) - 1)
    def _():
        o_ref[...] = (acc_ref[...]
                      + b_ref[...].astype(jnp.float32)).astype(o_ref.dtype)


def matmul_bias(x2d, w_t, b, *, out_dtype=None,
                tm_target=256, tn_target=512, tk_target=512):
    """x2d: (N, K), w_t: (K, M), b: (1, M) -> (N, M) in out_dtype.

    Fixed aligned tiles (tm mult of 8, tn/tk mult of 128; tn aims at 256+ for
    the v6e/v7x 256x256 MXU).  Arrays are explicitly zero-padded to tile
    multiples (correct for the K reduction) and the result is sliced back --
    no silent full-dimension fallback for awkward N / K / vocab sizes.
    """
    N, K = x2d.shape
    M = w_t.shape[-1]
    out_dtype = out_dtype if out_dtype is not None else x2d.dtype

    tm = min(tm_target, _round_up(N, 8))
    tn = min(tn_target, _round_up(M, 128))
    tk = min(tk_target, _round_up(K, 128))
    Np, Kp, Mp = _round_up(N, tm), _round_up(K, tk), _round_up(M, tn)

    if (Np, Kp) != (N, K):
        x2d = jnp.pad(x2d, ((0, Np - N), (0, Kp - K)))
    if (Kp, Mp) != (K, M):
        w_t = jnp.pad(w_t, ((0, Kp - K), (0, Mp - M)))
    if Mp != M:
        b = jnp.pad(b, ((0, 0), (0, Mp - M)))

    grid = (Np // tm, Mp // tn, Kp // tk)
    grid_spec = pltpu.PrefetchScalarGridSpec(
        num_scalar_prefetch=0,
        grid=grid,
        in_specs=[
            pl.BlockSpec((tm, tk), lambda i, j, k: (i, k)),
            pl.BlockSpec((tk, tn), lambda i, j, k: (k, j)),
            pl.BlockSpec((1, tn), lambda i, j, k: (0, j)),
        ],
        out_specs=pl.BlockSpec((tm, tn), lambda i, j, k: (i, j)),
        scratch_shapes=[pltpu.VMEM((tm, tn), jnp.float32)],
    )
    out = pl.pallas_call(
        _matmul_bias_kernel,
        out_shape=jax.ShapeDtypeStruct((Np, Mp), out_dtype),
        grid_spec=grid_spec,
        compiler_params=pltpu.CompilerParams(
            dimension_semantics=("parallel", "parallel", "arbitrary")),
    )(x2d, w_t, b)
    return out[:N, :M]


# ---------------------------------------------------------------------------
# Recurrent LSTM kernel: time-major, time-chunked scan with only h @ W_hh^T
# on the serial path.  Live h/c state lives in the resident h_n/c_n output
# blocks (constant index map along the time axis).
# ---------------------------------------------------------------------------
def _make_lstm_scan_kernel(Tt, H, unroll):
    def kernel(gin_ref, whh_ref, h0_ref, c0_ref, y_ref, hn_ref, cn_ref):
        # New batch block: seed the resident state blocks from h0/c0.
        @pl.when(pl.program_id(1) == 0)
        def _():
            hn_ref[...] = h0_ref[...]
            cn_ref[...] = c0_ref[...]

        w_hh = whh_ref[...]                       # (H, 4H) bf16, resident

        def step(s, carry):
            h, c = carry                          # f32 (Tb, H)
            # Time-major: gin_ref[s] is a contiguous lane-dense (Tb, 4H) tile;
            # gates_in (x@W_ih^T + biases) was hoisted out of the recurrence.
            gates = gin_ref[s].astype(jnp.float32) + jnp.dot(
                h.astype(w_hh.dtype), w_hh,
                preferred_element_type=jnp.float32)
            ifo = jax.nn.sigmoid(gates[:, :3 * H])    # one fused sigmoid i|f|o
            g = jnp.tanh(gates[:, 3 * H:])
            c = ifo[:, H:2 * H] * c + ifo[:, :H] * g
            h = ifo[:, 2 * H:] * jnp.tanh(c)
            y_ref[s] = h.astype(y_ref.dtype)          # lane-dense (Tb, H) store
            return h, c

        # Visible loop with bounded unroll (keeps vreg live ranges bounded).
        h, c = jax.lax.fori_loop(0, Tt, step, (hn_ref[...], cn_ref[...]),
                                 unroll=unroll)
        hn_ref[...] = h
        cn_ref[...] = c

    return kernel


def lstm_layer(gates_in, w_hh_t, h0, c0, *, time_chunk_target=8):
    """One LSTM layer over the whole sequence, given the precomputed input
    projection (time-major).

    gates_in : (T, Bp, 4H) bf16   x_t @ W_ih^T + b_ih + b_hh, gates [i|f|o|g]
    w_hh_t   : (H, 4H) bf16
    h0, c0   : (Bp, H) f32
    returns y (T, Bp, H) bf16, h_n (Bp, H) f32, c_n (Bp, H) f32
    """
    T, Bp, G = gates_in.shape
    H = G // 4
    Tt = _largest_divisor_leq(T, time_chunk_target)
    # Optional batch split for megacore (v7x 2 TCs); blocks stay 8-aligned.
    Tb = Bp // 2 if (Bp >= 16 and Bp % 16 == 0) else Bp
    nb, nt = Bp // Tb, T // Tt
    unroll = True if Tt <= 8 else 4

    grid_spec = pltpu.PrefetchScalarGridSpec(
        num_scalar_prefetch=0,
        grid=(nb, nt),
        in_specs=[
            pl.BlockSpec((Tt, Tb, G), lambda b, t: (t, b, 0)),   # gates chunk
            _maybe_buffered_spec((H, G), lambda b, t: (0, 0)),   # W_hh resident
            pl.BlockSpec((Tb, H), lambda b, t: (b, 0)),          # h0
            pl.BlockSpec((Tb, H), lambda b, t: (b, 0)),          # c0
        ],
        out_specs=[
            pl.BlockSpec((Tt, Tb, H), lambda b, t: (t, b, 0)),   # y chunk
            pl.BlockSpec((Tb, H), lambda b, t: (b, 0)),          # h_n (state)
            pl.BlockSpec((Tb, H), lambda b, t: (b, 0)),          # c_n (state)
        ],
    )
    y, h_n, c_n = pl.pallas_call(
        _make_lstm_scan_kernel(Tt, H, unroll),
        out_shape=(
            jax.ShapeDtypeStruct((T, Bp, H), gates_in.dtype),
            jax.ShapeDtypeStruct((Bp, H), jnp.float32),
            jax.ShapeDtypeStruct((Bp, H), jnp.float32),
        ),
        grid_spec=grid_spec,
        compiler_params=pltpu.CompilerParams(
            dimension_semantics=("parallel", "arbitrary")),
    )(gates_in, w_hh_t, h0, c0)
    return y, h_n, c_n


# ---------------------------------------------------------------------------
# Parameters (PyTorch layout -> kernel layout)
# ---------------------------------------------------------------------------
def _pt_gates_to_kernel_layout(w_or_b):
    """PyTorch packs LSTM gates as [i|f|g|o] along dim 0; repack to [i|f|o|g]
    so the three sigmoid gates form one contiguous slab."""
    i, f, g, o = jnp.split(w_or_b, 4, axis=0)
    return jnp.concatenate([i, f, o, g], axis=0)


def init_params(key, vocab_size, embedding_dim, hidden_dim, num_layers):
    params = {}
    k_emb, k_fc_w, k_fc_b, *k_layers = jax.random.split(key, 3 + num_layers)
    params["embedding"] = jax.random.normal(
        k_emb, (vocab_size, embedding_dim), jnp.float32)

    stdv = 1.0 / float(hidden_dim) ** 0.5
    layers = []
    for l in range(num_layers):
        in_dim = embedding_dim if l == 0 else hidden_dim
        ka, kb, kc, kd = jax.random.split(k_layers[l], 4)
        w_ih = jax.random.uniform(ka, (4 * hidden_dim, in_dim),
                                  jnp.float32, -stdv, stdv)
        w_hh = jax.random.uniform(kb, (4 * hidden_dim, hidden_dim),
                                  jnp.float32, -stdv, stdv)
        b_ih = jax.random.uniform(kc, (4 * hidden_dim,), jnp.float32, -stdv, stdv)
        b_hh = jax.random.uniform(kd, (4 * hidden_dim,), jnp.float32, -stdv, stdv)
        layers.append({
            # bf16 weights (MXU-native, half the HBM/VMEM bytes); f32 accumulate.
            "w_ih_t": _pt_gates_to_kernel_layout(w_ih).T.astype(jnp.bfloat16),
            "w_hh_t": _pt_gates_to_kernel_layout(w_hh).T.astype(jnp.bfloat16),
            "bias": _pt_gates_to_kernel_layout(b_ih + b_hh)[None, :],  # f32 (1,4H)
        })
    params["lstm"] = layers

    fc_w = jax.random.uniform(k_fc_w, (vocab_size, hidden_dim),
                              jnp.float32, -stdv, stdv)
    fc_b = jax.random.uniform(k_fc_b, (vocab_size,), jnp.float32, -stdv, stdv)
    params["fc_w_t"] = fc_w.T.astype(jnp.bfloat16)   # (H, V) bf16
    params["fc_b"] = fc_b[None, :]                   # (1, V) f32
    return params


# ---------------------------------------------------------------------------
# Model forward (time-major internally; API stays batch-first like nn.LSTM)
# ---------------------------------------------------------------------------
@jax.jit
def lstm_model_forward(params, x, hidden_state=None):
    """x: (B, T) int32 token ids.  Returns (logits (B,T,V), (h_n, c_n))."""
    B, T = x.shape
    num_layers = len(params["lstm"])
    H = params["lstm"][0]["w_hh_t"].shape[0]
    Bp = _round_up(B, 8)   # sublane-aligned batch for the recurrent matmul

    # Transpose the cheap int32 ids, not the activations: everything
    # downstream is naturally time-major.
    x_tm = jnp.transpose(x, (1, 0))                    # (T, B)
    if Bp != B:
        x_tm = jnp.pad(x_tm, ((0, 0), (0, Bp - B)))
    # Embedding lookup (gather) -- plain JAX glue.
    embedded = jnp.take(params["embedding"], x_tm, axis=0)   # (T, Bp, E) f32

    if hidden_state is None:
        h0 = jnp.zeros((num_layers, Bp, H), jnp.float32)
        c0 = jnp.zeros((num_layers, Bp, H), jnp.float32)
    else:
        h0, c0 = hidden_state
        if Bp != B:
            h0 = jnp.pad(h0, ((0, 0), (0, Bp - B), (0, 0)))
            c0 = jnp.pad(c0, ((0, 0), (0, Bp - B), (0, 0)))

    layer_in = embedded                                 # (T, Bp, in_dim)
    h_finals, c_finals = [], []
    for l, lp in enumerate(params["lstm"]):
        in_dim = layer_in.shape[-1]
        # Hoisted input projection with folded bias: one big parallel matmul
        # over N = T*Bp rows (contiguous reshape, no transpose); bf16 in/out.
        gates_in = matmul_bias(
            layer_in.reshape(T * Bp, in_dim).astype(jnp.bfloat16),
            lp["w_ih_t"], lp["bias"], out_dtype=jnp.bfloat16,
        ).reshape(T, Bp, 4 * H)
        layer_out, h_n, c_n = lstm_layer(gates_in, lp["w_hh_t"], h0[l], c0[l])
        h_finals.append(h_n)
        c_finals.append(c_n)
        layer_in = layer_out
        # TODO(synk): nn.LSTM inter-layer dropout is train-only; eval semantics (no dropout) reproduced here.

    logits_tm = matmul_bias(
        layer_in.reshape(T * Bp, H), params["fc_w_t"], params["fc_b"],
        out_dtype=jnp.float32,
    ).reshape(T, Bp, -1)                                # (T, Bp, V)
    logits = jnp.transpose(logits_tm[:, :B, :], (1, 0, 2))   # (B, T, V)

    h_n = jnp.stack(h_finals, axis=0)[:, :B, :]
    c_n = jnp.stack(c_finals, axis=0)[:, :B, :]
    return logits, (h_n, c_n)


# ---------------------------------------------------------------------------
# Pure-JAX reference (same params / gate layout, f32 activations) for
# numerical validation of the bf16 kernels.
# ---------------------------------------------------------------------------
def _reference_forward(params, x, hidden_state=None):
    B, T = x.shape
    L = len(params["lstm"])
    H = params["lstm"][0]["w_hh_t"].shape[0]
    emb = jnp.take(params["embedding"], x, axis=0)
    if hidden_state is None:
        h0 = jnp.zeros((L, B, H), jnp.float32)
        c0 = jnp.zeros((L, B, H), jnp.float32)
    else:
        h0, c0 = hidden_state
    layer_in = emb
    h_fin, c_fin = [], []
    for l, lp in enumerate(params["lstm"]):
        w_ih = lp["w_ih_t"].astype(jnp.float32)
        w_hh = lp["w_hh_t"].astype(jnp.float32)
        bias = lp["bias"][0].astype(jnp.float32)

        def step(carry, x_t, w_ih=w_ih, w_hh=w_hh, bias=bias):
            h, c = carry
            gates = x_t @ w_ih + h @ w_hh + bias
            i = jax.nn.sigmoid(gates[:, :H])
            f = jax.nn.sigmoid(gates[:, H:2 * H])
            o = jax.nn.sigmoid(gates[:, 2 * H:3 * H])
            g = jnp.tanh(gates[:, 3 * H:])
            c = f * c + i * g
            h = o * jnp.tanh(c)
            return (h, c), h

        (hN, cN), ys = jax.lax.scan(step, (h0[l], c0[l]),
                                    jnp.transpose(layer_in, (1, 0, 2)))
        layer_in = jnp.transpose(ys, (1, 0, 2))
        h_fin.append(hN)
        c_fin.append(cN)
    logits = (layer_in.reshape(B * T, H) @ params["fc_w_t"].astype(jnp.float32)
              + params["fc_b"][0])
    return logits.reshape(B, T, -1), (jnp.stack(h_fin), jnp.stack(c_fin))


# ----------------------------------- Main ------------------------------------
if __name__ == "__main__":
    vocab_size, embedding_dim, hidden_dim, num_layers = 64, 32, 32, 2
    batch, seq = 2, 8

    key = jax.random.PRNGKey(0)
    k_params, k_x = jax.random.split(key)
    params = init_params(k_params, vocab_size, embedding_dim, hidden_dim,
                         num_layers)
    x = jax.random.randint(k_x, (batch, seq), 0, vocab_size, dtype=jnp.int32)

    logits, (h_n, c_n) = lstm_model_forward(params, x)
    jax.block_until_ready((logits, h_n, c_n))

    assert logits.shape == (batch, seq, vocab_size)
    assert h_n.shape == (num_layers, batch, hidden_dim)
    assert c_n.shape == (num_layers, batch, hidden_dim)
    assert bool(jnp.all(jnp.isfinite(logits)))

    # Numerical check against a pure-JAX f32 reference with identical
    # (bf16-quantized) weights; tolerance accounts for bf16 activations.
    ref_logits, (ref_h, ref_c) = _reference_forward(params, x)
    assert bool(jnp.allclose(logits, ref_logits, atol=3e-2, rtol=3e-2)), \
        float(jnp.max(jnp.abs(logits - ref_logits)))
    assert bool(jnp.allclose(h_n, ref_h, atol=3e-2, rtol=3e-2))
    assert bool(jnp.allclose(c_n, ref_c, atol=3e-2, rtol=3e-2))

    print("KERNEL_OK")
</pallas_src>

<mosaic_0001>
module attributes {stable_mosaic.version = 11 : i64} {
  func.func @_matmul_bias_kernel(%arg0: i32, %arg1: i32, %arg2: i32, %arg3: memref<64x128xbf16, #tpu.memory_space<vmem>>, %arg4: memref<128x128xbf16, #tpu.memory_space<vmem>>, %arg5: memref<1x128xf32, #tpu.memory_space<vmem>>, %arg6: memref<64x128xbf16, #tpu.memory_space<vmem>>, %arg7: memref<64x128xf32, #tpu.memory_space<vmem>>) attributes {dimension_semantics = [#tpu.dimension_semantics<parallel>, #tpu.dimension_semantics<parallel>, #tpu.dimension_semantics<arbitrary>], iteration_bounds = array<i64: 1, 1, 1>, scalar_prefetch = 0 : i64, scratch_operands = 1 : i64, tpu.core_type = #tpu.core_type<tc>, window_params = [{transform_indices = @transform_0, window_bounds = array<i64: 64, 128>}, {transform_indices = @transform_1, window_bounds = array<i64: 128, 128>}, {transform_indices = @transform_2, window_bounds = array<i64: 1, 128>}, {transform_indices = @transform_3, window_bounds = array<i64: 64, 128>}]} {
    %c0_i32 = arith.constant 0 : i32
    %0 = arith.cmpi eq, %arg2, %c0_i32 : i32
    %1 = arith.extui %0 : i1 to i32
    %c0_i32_0 = arith.constant 0 : i32
    %2 = arith.cmpi ne, %1, %c0_i32_0 : i32
    scf.if %2 {
      %cst_10 = arith.constant 0.000000e+00 : f32
      %12 = vector.broadcast %cst_10 : f32 to vector<64x128xf32>
      %c0_11 = arith.constant 0 : index
      %c0_12 = arith.constant 0 : index
      %13 = vector.load %arg7[%c0_11, %c0_12] : memref<64x128xf32, #tpu.memory_space<vmem>>, vector<64x128xf32>
      tpu.vector_store %arg7[%c0_11, %c0_12], %12 {strides = array<i32>} : memref<64x128xf32, #tpu.memory_space<vmem>>, vector<64x128xf32>,
    } else {
    }
    %c0 = arith.constant 0 : index
    %c0_1 = arith.constant 0 : index
    %3 = vector.load %arg7[%c0, %c0_1] : memref<64x128xf32, #tpu.memory_space<vmem>>, vector<64x128xf32>
    %c0_2 = arith.constant 0 : index
    %c0_3 = arith.constant 0 : index
    %4 = vector.load %arg3[%c0_2, %c0_3] : memref<64x128xbf16, #tpu.memory_space<vmem>>, vector<64x128xbf16>
    %c0_4 = arith.constant 0 : index
    %c0_5 = arith.constant 0 : index
    %5 = vector.load %arg4[%c0_4, %c0_5] : memref<128x128xbf16, #tpu.memory_space<vmem>>, vector<128x128xbf16>
    %cst = arith.constant dense<0.000000e+00> : vector<64x128xf32>
    %6 = tpu.matmul %4, %5, %cst {dimension_numbers = #tpu.dot_dimension_numbers<[1], [0], [0], [1], [0, 0, 1, 1], [], []>} : vector<64x128xbf16>, vector<128x128xbf16>, vector<64x128xf32> -> vector<64x128xf32>
    %7 = arith.addf %3, %6 : vector<64x128xf32>
    %c0_6 = arith.constant 0 : index
    %c0_7 = arith.constant 0 : index
    %8 = vector.load %arg7[%c0_6, %c0_7] : memref<64x128xf32, #tpu.memory_space<vmem>>, vector<64x128xf32>
    tpu.vector_store %arg7[%c0_6, %c0_7], %7 {strides = array<i32>} : memref<64x128xf32, #tpu.memory_space<vmem>>, vector<64x128xf32>,
    %c0_i32_8 = arith.constant 0 : i32
    %9 = arith.cmpi eq, %arg2, %c0_i32_8 : i32
    %10 = arith.extui %9 : i1 to i32
    %c0_i32_9 = arith.constant 0 : i32
    %11 = arith.cmpi ne, %10, %c0_i32_9 : i32
    scf.if %11 {
      %c0_10 = arith.constant 0 : index
      %c0_11 = arith.constant 0 : index
      %12 = vector.load %arg7[%c0_10, %c0_11] : memref<64x128xf32, #tpu.memory_space<vmem>>, vector<64x128xf32>
      %c0_12 = arith.constant 0 : index
      %c0_13 = arith.constant 0 : index
      %13 = vector.load %arg5[%c0_12, %c0_13] : memref<1x128xf32, #tpu.memory_space<vmem>>, vector<1x128xf32>
      %14 = vector.broadcast %13 : vector<1x128xf32> to vector<64x128xf32>
      %15 = arith.addf %12, %14 : vector<64x128xf32>
      %16 = arith.truncf %15 : vector<64x128xf32> to vector<64x128xbf16>
      %c0_14 = arith.constant 0 : index
      %c0_15 = arith.constant 0 : index
      %17 = vector.load %arg6[%c0_14, %c0_15] : memref<64x128xbf16, #tpu.memory_space<vmem>>, vector<64x128xbf16>
      tpu.vector_store %arg6[%c0_14, %c0_15], %16 {strides = array<i32>} : memref<64x128xbf16, #tpu.memory_space<vmem>>, vector<64x128xbf16>,
    } else {
    }
    return
  }
  func.func @transform_0(%arg0: i32, %arg1: i32, %arg2: i32) -> (i32, i32) {
    %c0_i32 = arith.constant 0 : i32
    return %arg0, %arg2 : i32, i32
  }
  func.func @transform_1(%arg0: i32, %arg1: i32, %arg2: i32) -> (i32, i32) {
    %c0_i32 = arith.constant 0 : i32
    return %arg2, %arg1 : i32, i32
  }
  func.func @transform_2(%arg0: i32, %arg1: i32, %arg2: i32) -> (i32, i32) {
    %c0_i32 = arith.constant 0 : i32
    %c0_i32_0 = arith.constant 0 : i32
    return %c0_i32, %arg1 : i32, i32
  }
  func.func @transform_3(%arg0: i32, %arg1: i32, %arg2: i32) -> (i32, i32) {
    %c0_i32 = arith.constant 0 : i32
    return %arg0, %arg1 : i32, i32
  }
}

module attributes {stable_mosaic.version = 11 : i64} {
  func.func @kernel(%arg0: i32, %arg1: i32, %arg2: memref<8x8x128xbf16, #tpu.memory_space<vmem>>, %arg3: memref<32x128xbf16, #tpu.memory_space<vmem>>, %arg4: memref<8x32xf32, #tpu.memory_space<vmem>>, %arg5: memref<8x32xf32, #tpu.memory_space<vmem>>, %arg6: memref<8x8x32xbf16, #tpu.memory_space<vmem>>, %arg7: memref<8x32xf32, #tpu.memory_space<vmem>>, %arg8: memref<8x32xf32, #tpu.memory_space<vmem>>) attributes {dimension_semantics = [#tpu.dimension_semantics<parallel>, #tpu.dimension_semantics<arbitrary>], iteration_bounds = array<i64: 1, 1>, scalar_prefetch = 0 : i64, scratch_operands = 0 : i64, tpu.core_type = #tpu.core_type<tc>, window_params = [{transform_indices = @transform_0, window_bounds = array<i64: 8, 8, 128>}, {pipeline_mode = #tpu.pipeline_mode<synchronous>, transform_indices = @transform_1, window_bounds = array<i64: 32, 128>}, {transform_indices = @transform_2, window_bounds = array<i64: 8, 32>}, {transform_indices = @transform_3, window_bounds = array<i64: 8, 32>}, {transform_indices = @transform_4, window_bounds = array<i64: 8, 8, 32>}, {transform_indices = @transform_5, window_bounds = array<i64: 8, 32>}, {transform_indices = @transform_6, window_bounds = array<i64: 8, 32>}]} {
    %c0_i32 = arith.constant 0 : i32
    %0 = arith.cmpi eq, %arg1, %c0_i32 : i32
    %1 = arith.extui %0 : i1 to i32
    %c0_i32_0 = arith.constant 0 : i32
    %2 = arith.cmpi ne, %1, %c0_i32_0 : i32
    scf.if %2 {
      %c0_58 = arith.constant 0 : index
      %c0_59 = arith.constant 0 : index
      %232 = vector.load %arg4[%c0_58, %c0_59] : memref<8x32xf32, #tpu.memory_space<vmem>>, vector<8x32xf32>
      %c0_60 = arith.constant 0 : index
      %c0_61 = arith.constant 0 : index
      %233 = vector.load %arg7[%c0_60, %c0_61] : memref<8x32xf32, #tpu.memory_space<vmem>>, vector<8x32xf32>
      tpu.vector_store %arg7[%c0_60, %c0_61], %232 {strides = array<i32>} : memref<8x32xf32, #tpu.memory_space<vmem>>, vector<8x32xf32>,
      %c0_62 = arith.constant 0 : index
      %c0_63 = arith.constant 0 : index
      %234 = vector.load %arg5[%c0_62, %c0_63] : memref<8x32xf32, #tpu.memory_space<vmem>>, vector<8x32xf32>
      %c0_64 = arith.constant 0 : index
      %c0_65 = arith.constant 0 : index
      %235 = vector.load %arg8[%c0_64, %c0_65] : memref<8x32xf32, #tpu.memory_space<vmem>>, vector<8x32xf32>
      tpu.vector_store %arg8[%c0_64, %c0_65], %234 {strides = array<i32>} : memref<8x32xf32, #tpu.memory_space<vmem>>, vector<8x32xf32>,
    } else {
    }
    %c0 = arith.constant 0 : index
    %c0_1 = arith.constant 0 : index
    %3 = vector.load %arg3[%c0, %c0_1] : memref<32x128xbf16, #tpu.memory_space<vmem>>, vector<32x128xbf16>
    %c0_2 = arith.constant 0 : index
    %c0_3 = arith.constant 0 : index
    %4 = vector.load %arg7[%c0_2, %c0_3] : memref<8x32xf32, #tpu.memory_space<vmem>>, vector<8x32xf32>
    %c0_4 = arith.constant 0 : index
    %c0_5 = arith.constant 0 : index
    %5 = vector.load %arg8[%c0_4, %c0_5] : memref<8x32xf32, #tpu.memory_space<vmem>>, vector<8x32xf32>
    %c0_i32_6 = arith.constant 0 : i32
    %6 = arith.index_cast %c0_i32_6 : i32 to index
    %c0_7 = arith.constant 0 : index
    %c0_8 = arith.constant 0 : index
    %7 = vector.load %arg2[%6, %c0_7, %c0_8] : memref<8x8x128xbf16, #tpu.memory_space<vmem>>, vector<1x8x128xbf16>
    %8 = vector.shape_cast %7 : vector<1x8x128xbf16> to vector<8x128xbf16>
    %9 = arith.extf %8 : vector<8x128xbf16> to vector<8x128xf32>
    %10 = arith.truncf %4 : vector<8x32xf32> to vector<8x32xbf16>
    %cst = arith.constant dense<0.000000e+00> : vector<8x128xf32>
    %11 = tpu.matmul %10, %3, %cst {dimension_numbers = #tpu.dot_dimension_numbers<[1], [0], [0], [1], [0, 0, 1, 1], [], []>} : vector<8x32xbf16>, vector<32x128xbf16>, vector<8x128xf32> -> vector<8x128xf32>
    %12 = arith.addf %9, %11 : vector<8x128xf32>
    %13 = vector.extract_strided_slice %12 {offsets = [0, 0], sizes = [8, 96], strides = [1, 1]} : vector<8x128xf32> to vector<8x96xf32>
    %14 = arith.negf %13 : vector<8x96xf32>
    %15 = math.exp %14 : vector<8x96xf32>
    %cst_9 = arith.constant 1.000000e+00 : f32
    %16 = vector.broadcast %cst_9 : f32 to vector<8x96xf32>
    %17 = arith.addf %16, %15 : vector<8x96xf32>
    %18 = arith.divf %16, %17 : vector<8x96xf32>
    %19 = vector.extract_strided_slice %12 {offsets = [0, 96], sizes = [8, 32], strides = [1, 1]} : vector<8x128xf32> to vector<8x32xf32>
    %20 = math.tanh %19 : vector<8x32xf32>
    %21 = vector.extract_strided_slice %18 {offsets = [0, 32], sizes = [8, 32], strides = [1, 1]} : vector<8x96xf32> to vector<8x32xf32>
    %22 = arith.mulf %21, %5 : vector<8x32xf32>
    %23 = vector.extract_strided_slice %18 {offsets = [0, 0], sizes = [8, 32], strides = [1, 1]} : vector<8x96xf32> to vector<8x32xf32>
    %24 = arith.mulf %23, %20 : vector<8x32xf32>
    %25 = arith.addf %22, %24 : vector<8x32xf32>
    %26 = vector.extract_strided_slice %18 {offsets = [0, 64], sizes = [8, 32], strides = [1, 1]} : vector<8x96xf32> to vector<8x32xf32>
    %27 = math.tanh %25 : vector<8x32xf32>
    %28 = arith.mulf %26, %27 : vector<8x32xf32>
    %29 = arith.truncf %28 : vector<8x32xf32> to vector<8x32xbf16>
    %30 = arith.index_cast %c0_i32_6 : i32 to index
    %c0_10 = arith.constant 0 : index
    %c0_11 = arith.constant 0 : index
    %31 = vector.load %arg6[%30, %c0_10, %c0_11] : memref<8x8x32xbf16, #tpu.memory_space<vmem>>, vector<1x8x32xbf16>
    %32 = vector.shape_cast %31 : vector<1x8x32xbf16> to vector<8x32xbf16>
    %33 = vector.shape_cast %29 : vector<8x32xbf16> to vector<1x8x32xbf16>
    tpu.vector_store %arg6[%30, %c0_10, %c0_11], %33 {strides = array<i32>} : memref<8x8x32xbf16, #tpu.memory_space<vmem>>, vector<1x8x32xbf16>,
    %c1_i32 = arith.constant 1 : i32
    %34 = arith.index_cast %c1_i32 : i32 to index
    %c0_12 = arith.constant 0 : index
    %c0_13 = arith.constant 0 : index
    %35 = vector.load %arg2[%34, %c0_12, %c0_13] : memref<8x8x128xbf16, #tpu.memory_space<vmem>>, vector<1x8x128xbf16>
    %36 = vector.shape_cast %35 : vector<1x8x128xbf16> to vector<8x128xbf16>
    %37 = arith.extf %36 : vector<8x128xbf16> to vector<8x128xf32>
    %38 = arith.truncf %28 : vector<8x32xf32> to vector<8x32xbf16>
    %cst_14 = arith.constant dense<0.000000e+00> : vector<8x128xf32>
    %39 = tpu.matmul %38, %3, %cst_14 {dimension_numbers = #tpu.dot_dimension_numbers<[1], [0], [0], [1], [0, 0, 1, 1], [], []>} : vector<8x32xbf16>, vector<32x128xbf16>, vector<8x128xf32> -> vector<8x128xf32>
    %40 = arith.addf %37, %39 : vector<8x128xf32>
    %41 = vector.extract_strided_slice %40 {offsets = [0, 0], sizes = [8, 96], strides = [1, 1]} : vector<8x128xf32> to vector<8x96xf32>
    %42 = arith.negf %41 : vector<8x96xf32>
    %43 = math.exp %42 : vector<8x96xf32>
    %cst_15 = arith.constant 1.000000e+00 : f32
    %44 = vector.broadcast %cst_15 : f32 to vector<8x96xf32>
    %45 = arith.addf %44, %43 : vector<8x96xf32>
    %46 = arith.divf %44, %45 : vector<8x96xf32>
    %47 = vector.extract_strided_slice %40 {offsets = [0, 96], sizes = [8, 32], strides = [1, 1]} : vector<8x128xf32> to vector<8x32xf32>
    %48 = math.tanh %47 : vector<8x32xf32>
    %49 = vector.extract_strided_slice %46 {offsets = [0, 32], sizes = [8, 32], strides = [1, 1]} : vector<8x96xf32> to vector<8x32xf32>
    %50 = arith.mulf %49, %25 : vector<8x32xf32>
    %51 = vector.extract_strided_slice %46 {offsets = [0, 0], sizes = [8, 32], strides = [1, 1]} : vector<8x96xf32> to vector<8x32xf32>
    %52 = arith.mulf %51, %48 : vector<8x32xf32>
    %53 = arith.addf %50, %52 : vector<8x32xf32>
    %54 = vector.extract_strided_slice %46 {offsets = [0, 64], sizes = [8, 32], strides = [1, 1]} : vector<8x96xf32> to vector<8x32xf32>
    %55 = math.tanh %53 : vector<8x32xf32>
    %56 = arith.mulf %54, %55 : vector<8x32xf32>
    %57 = arith.truncf %56 : vector<8x32xf32> to vector<8x32xbf16>
    %58 = arith.index_cast %c1_i32 : i32 to index
    %c0_16 = arith.constant 0 : index
    %c0_17 = arith.constant 0 : index
    %59 = vector.load %arg6[%58, %c0_16, %c0_17] : memref<8x8x32xbf16, #tpu.memory_space<vmem>>, vector<1x8x32xbf16>
    %60 = vector.shape_cast %59 : vector<1x8x32xbf16> to vector<8x32xbf16>
    %61 = vector.shape_cast %57 : vector<8x32xbf16> to vector<1x8x32xbf16>
    tpu.vector_store %arg6[%58, %c0_16, %c0_17], %61 {strides = array<i32>} : memref<8x8x32xbf16, #tpu.memory_space<vmem>>, vector<1x8x32xbf16>,
    %c2_i32 = arith.constant 2 : i32
    %62 = arith.index_cast %c2_i32 : i32 to index
    %c0_18 = arith.constant 0 : index
    %c0_19 = arith.constant 0 : index
    %63 = vector.load %arg2[%62, %c0_18, %c0_19] : memref<8x8x128xbf16, #tpu.memory_space<vmem>>, vector<1x8x128xbf16>
    %64 = vector.shape_cast %63 : vector<1x8x128xbf16> to vector<8x128xbf16>
    %65 = arith.extf %64 : vector<8x128xbf16> to vector<8x128xf32>
    %66 = arith.truncf %56 : vector<8x32xf32> to vector<8x32xbf16>
    %cst_20 = arith.constant dense<0.000000e+00> : vector<8x128xf32>
    %67 = tpu.matmul %66, %3, %cst_20 {dimension_numbers = #tpu.dot_dimension_numbers<[1], [0], [0], [1], [0, 0, 1, 1], [], []>} : vector<8x32xbf16>, vector<32x128xbf16>, vector<8x128xf32> -> vector<8x128xf32>
    %68 = arith.addf %65, %67 : vector<8x128xf32>
    %69 = vector.extract_strided_slice %68 {offsets = [0, 0], sizes = [8, 96], strides = [1, 1]} : vector<8x128xf32> to vector<8x96xf32>
    %70 = arith.negf %69 : vector<8x96xf32>
    %71 = math.exp %70 : vector<8x96xf32>
    %cst_21 = arith.constant 1.000000e+00 : f32
    %72 = vector.broadcast %cst_21 : f32 to vector<8x96xf32>
    %73 = arith.addf %72, %71 : vector<8x96xf32>
    %74 = arith.divf %72, %73 : vector<8x96xf32>
    %75 = vector.extract_strided_slice %68 {offsets = [0, 96], sizes = [8, 32], strides = [1, 1]} : vector<8x128xf32> to vector<8x32xf32>
    %76 = math.tanh %75 : vector<8x32xf32>
    %77 = vector.extract_strided_slice %74 {offsets = [0, 32], sizes = [8, 32], strides = [1, 1]} : vector<8x96xf32> to vector<8x32xf32>
    %78 = arith.mulf %77, %53 : vector<8x32xf32>
    %79 = vector.extract_strided_slice %74 {offsets = [0, 0], sizes = [8, 32], strides = [1, 1]} : vector<8x96xf32> to vector<8x32xf32>
    %80 = arith.mulf %79, %76 : vector<8x32xf32>
    %81 = arith.addf %78, %80 : vector<8x32xf32>
    %82 = vector.extract_strided_slice %74 {offsets = [0, 64], sizes = [8, 32], strides = [1, 1]} : vector<8x96xf32> to vector<8x32xf32>
    %83 = math.tanh %81 : vector<8x32xf32>
    %84 = arith.mulf %82, %83 : vector<8x32xf32>
    %85 = arith.truncf %84 : vector<8x32xf32> to vector<8x32xbf16>
    %86 = arith.index_cast %c2_i32 : i32 to index
    %c0_22 = arith.constant 0 : index
    %c0_23 = arith.constant 0 : index
    %87 = vector.load %arg6[%86, %c0_22, %c0_23] : memref<8x8x32xbf16, #tpu.memory_space<vmem>>, vector<1x8x32xbf16>
    %88 = vector.shape_cast %87 : vector<1x8x32xbf16> to vector<8x32xbf16>
    %89 = vector.shape_cast %85 : vector<8x32xbf16> to vector<1x8x32xbf16>
    tpu.vector_store %arg6[%86, %c0_22, %c0_23], %89 {strides = array<i32>} : memref<8x8x32xbf16, #tpu.memory_space<vmem>>, vector<1x8x32xbf16>,
    %c3_i32 = arith.constant 3 : i32
    %90 = arith.index_cast %c3_i32 : i32 to index
    %c0_24 = arith.constant 0 : index
    %c0_25 = arith.constant 0 : index
    %91 = vector.load %arg2[%90, %c0_24, %c0_25] : memref<8x8x128xbf16, #tpu.memory_space<vmem>>, vector<1x8x128xbf16>
    %92 = vector.shape_cast %91 : vector<1x8x128xbf16> to vector<8x128xbf16>
    %93 = arith.extf %92 : vector<8x128xbf16> to vector<8x128xf32>
    %94 = arith.truncf %84 : vector<8x32xf32> to vector<8x32xbf16>
    %cst_26 = arith.constant dense<0.000000e+00> : vector<8x128xf32>
    %95 = tpu.matmul %94, %3, %cst_26 {dimension_numbers = #tpu.dot_dimension_numbers<[1], [0], [0], [1], [0, 0, 1, 1], [], []>} : vector<8x32xbf16>, vector<32x128xbf16>, vector<8x128xf32> -> vector<8x128xf32>
    %96 = arith.addf %93, %95 : vector<8x128xf32>
    %97 = vector.extract_strided_slice %96 {offsets = [0, 0], sizes = [8, 96], strides = [1, 1]} : vector<8x128xf32> to vector<8x96xf32>
    %98 = arith.negf %97 : vector<8x96xf32>
    %99 = math.exp %98 : vector<8x96xf32>
    %cst_27 = arith.constant 1.000000e+00 : f32
    %100 = vector.broadcast %cst_27 : f32 to vector<8x96xf32>
    %101 = arith.addf %100, %99 : vector<8x96xf32>
    %102 = arith.divf %100, %101 : vector<8x96xf32>
    %103 = vector.extract_strided_slice %96 {offsets = [0, 96], sizes = [8, 32], strides = [1, 1]} : vector<8x128xf32> to vector<8x32xf32>
    %104 = math.tanh %103 : vector<8x32xf32>
    %105 = vector.extract_strided_slice %102 {offsets = [0, 32], sizes = [8, 32], strides = [1, 1]} : vector<8x96xf32> to vector<8x32xf32>
    %106 = arith.mulf %105, %81 : vector<8x32xf32>
    %107 = vector.extract_strided_slice %102 {offsets = [0, 0], sizes = [8, 32], strides = [1, 1]} : vector<8x96xf32> to vector<8x32xf32>
    %108 = arith.mulf %107, %104 : vector<8x32xf32>
    %109 = arith.addf %106, %108 : vector<8x32xf32>
    %110 = vector.extract_strided_slice %102 {offsets = [0, 64], sizes = [8, 32], strides = [1, 1]} : vector<8x96xf32> to vector<8x32xf32>
    %111 = math.tanh %109 : vector<8x32xf32>
    %112 = arith.mulf %110, %111 : vector<8x32xf32>
    %113 = arith.truncf %112 : vector<8x32xf32> to vector<8x32xbf16>
    %114 = arith.index_cast %c3_i32 : i32 to index
    %c0_28 = arith.constant 0 : index
    %c0_29 = arith.constant 0 : index
    %115 = vector.load %arg6[%114, %c0_28, %c0_29] : memref<8x8x32xbf16, #tpu.memory_space<vmem>>, vector<1x8x32xbf16>
    %116 = vector.shape_cast %115 : vector<1x8x32xbf16> to vector<8x32xbf16>
    %117 = vector.shape_cast %113 : vector<8x32xbf16> to vector<1x8x32xbf16>
    tpu.vector_store %arg6[%114, %c0_28, %c0_29], %117 {strides = array<i32>} : memref<8x8x32xbf16, #tpu.memory_space<vmem>>, vector<1x8x32xbf16>,
    %c4_i32 = arith.constant 4 : i32
    %118 = arith.index_cast %c4_i32 : i32 to index
    %c0_30 = arith.constant 0 : index
    %c0_31 = arith.constant 0 : index
    %119 = vector.load %arg2[%118, %c0_30, %c0_31] : memref<8x8x128xbf16, #tpu.memory_space<vmem>>, vector<1x8x128xbf16>
    %120 = vector.shape_cast %119 : vector<1x8x128xbf16> to vector<8x128xbf16>
    %121 = arith.extf %120 : vector<8x128xbf16> to vector<8x128xf32>
    %122 = arith.truncf %112 : vector<8x32xf32> to vector<8x32xbf16>
    %cst_32 = arith.constant dense<0.000000e+00> : vector<8x128xf32>
    %123 = tpu.matmul %122, %3, %cst_32 {dimension_numbers = #tpu.dot_dimension_numbers<[1], [0], [0], [1], [0, 0, 1, 1], [], []>} : vector<8x32xbf16>, vector<32x128xbf16>, vector<8x128xf32> -> vector<8x128xf32>
    %124 = arith.addf %121, %123 : vector<8x128xf32>
    %125 = vector.extract_strided_slice %124 {offsets = [0, 0], sizes = [8, 96], strides = [1, 1]} : vector<8x128xf32> to vector<8x96xf32>
    %126 = arith.negf %125 : vector<8x96xf32>
    %127 = math.exp %126 : vector<8x96xf32>
    %cst_33 = arith.constant 1.000000e+00 : f32
    %128 = vector.broadcast %cst_33 : f32 to vector<8x96xf32>
    %129 = arith.addf %128, %127 : vector<8x96xf32>
    %130 = arith.divf %128, %129 : vector<8x96xf32>
    %131 = vector.extract_strided_slice %124 {offsets = [0, 96], sizes = [8, 32], strides = [1, 1]} : vector<8x128xf32> to vector<8x32xf32>
    %132 = math.tanh %131 : vector<8x32xf32>
    %133 = vector.extract_strided_slice %130 {offsets = [0, 32], sizes = [8, 32], strides = [1, 1]} : vector<8x96xf32> to vector<8x32xf32>
    %134 = arith.mulf %133, %109 : vector<8x32xf32>
    %135 = vector.extract_strided_slice %130 {offsets = [0, 0], sizes = [8, 32], strides = [1, 1]} : vector<8x96xf32> to vector<8x32xf32>
    %136 = arith.mulf %135, %132 : vector<8x32xf32>
    %137 = arith.addf %134, %136 : vector<8x32xf32>
    %138 = vector.extract_strided_slice %130 {offsets = [0, 64], sizes = [8, 32], strides = [1, 1]} : vector<8x96xf32> to vector<8x32xf32>
    %139 = math.tanh %137 : vector<8x32xf32>
    %140 = arith.mulf %138, %139 : vector<8x32xf32>
    %141 = arith.truncf %140 : vector<8x32xf32> to vector<8x32xbf16>
    %142 = arith.index_cast %c4_i32 : i32 to index
    %c0_34 = arith.constant 0 : index
    %c0_35 = arith.constant 0 : index
    %143 = vector.load %arg6[%142, %c0_34, %c0_35] : memref<8x8x32xbf16, #tpu.memory_space<vmem>>, vector<1x8x32xbf16>
    %144 = vector.shape_cast %143 : vector<1x8x32xbf16> to vector<8x32xbf16>
    %145 = vector.shape_cast %141 : vector<8x32xbf16> to vector<1x8x32xbf16>
    tpu.vector_store %arg6[%142, %c0_34, %c0_35], %145 {strides = array<i32>} : memref<8x8x32xbf16, #tpu.memory_space<vmem>>, vector<1x8x32xbf16>,
    %c5_i32 = arith.constant 5 : i32
    %146 = arith.index_cast %c5_i32 : i32 to index
    %c0_36 = arith.constant 0 : index
    %c0_37 = arith.constant 0 : index
    %147 = vector.load %arg2[%146, %c0_36, %c0_37] : memref<8x8x128xbf16, #tpu.memory_space<vmem>>, vector<1x8x128xbf16>
    %148 = vector.shape_cast %147 : vector<1x8x128xbf16> to vector<8x128xbf16>
    %149 = arith.extf %148 : vector<8x128xbf16> to vector<8x128xf32>
    %150 = arith.truncf %140 : vector<8x32xf32> to vector<8x32xbf16>
    %cst_38 = arith.constant dense<0.000000e+00> : vector<8x128xf32>
    %151 = tpu.matmul %150, %3, %cst_38 {dimension_numbers = #tpu.dot_dimension_numbers<[1], [0], [0], [1], [0, 0, 1, 1], [], []>} : vector<8x32xbf16>, vector<32x128xbf16>, vector<8x128xf32> -> vector<8x128xf32>
    %152 = arith.addf %149, %151 : vector<8x128xf32>
    %153 = vector.extract_strided_slice %152 {offsets = [0, 0], sizes = [8, 96], strides = [1, 1]} : vector<8x128xf32> to vector<8x96xf32>
    %154 = arith.negf %153 : vector<8x96xf32>
    %155 = math.exp %154 : vector<8x96xf32>
    %cst_39 = arith.constant 1.000000e+00 : f32
    %156 = vector.broadcast %cst_39 : f32 to vector<8x96xf32>
    %157 = arith.addf %156, %155 : vector<8x96xf32>
    %158 = arith.divf %156, %157 : vector<8x96xf32>
    %159 = vector.extract_strided_slice %152 {offsets = [0, 96], sizes = [8, 32], strides = [1, 1]} : vector<8x128xf32> to vector<8x32xf32>
    %160 = math.tanh %159 : vector<8x32xf32>
    %161 = vector.extract_strided_slice %158 {offsets = [0, 32], sizes = [8, 32], strides = [1, 1]} : vector<8x96xf32> to vector<8x32xf32>
    %162 = arith.mulf %161, %137 : vector<8x32xf32>
    %163 = vector.extract_strided_slice %158 {offsets = [0, 0], sizes = [8, 32], strides = [1, 1]} : vector<8x96xf32> to vector<8x32xf32>
    %164 = arith.mulf %163, %160 : vector<8x32xf32>
    %165 = arith.addf %162, %164 : vector<8x32xf32>
    %166 = vector.extract_strided_slice %158 {offsets = [0, 64], sizes = [8, 32], strides = [1, 1]} : vector<8x96xf32> to vector<8x32xf32>
    %167 = math.tanh %165 : vector<8x32xf32>
    %168 = arith.mulf %166, %167 : vector<8x32xf32>
    %169 = arith.truncf %168 : vector<8x32xf32> to vector<8x32xbf16>
    %170 = arith.index_cast %c5_i32 : i32 to index
    %c0_40 = arith.constant 0 : index
    %c0_41 = arith.constant 0 : index
    %171 = vector.load %arg6[%170, %c0_40, %c0_41] : memref<8x8x32xbf16, #tpu.memory_space<vmem>>, vector<1x8x32xbf16>
    %172 = vector.shape_cast %171 : vector<1x8x32xbf16> to vector<8x32xbf16>
    %173 = vector.shape_cast %169 : vector<8x32xbf16> to vector<1x8x32xbf16>
    tpu.vector_store %arg6[%170, %c0_40, %c0_41], %173 {strides = array<i32>} : memref<8x8x32xbf16, #tpu.memory_space<vmem>>, vector<1x8x32xbf16>,
    %c6_i32 = arith.constant 6 : i32
    %174 = arith.index_cast %c6_i32 : i32 to index
    %c0_42 = arith.constant 0 : index
    %c0_43 = arith.constant 0 : index
    %175 = vector.load %arg2[%174, %c0_42, %c0_43] : memref<8x8x128xbf16, #tpu.memory_space<vmem>>, vector<1x8x128xbf16>
    %176 = vector.shape_cast %175 : vector<1x8x128xbf16> to vector<8x128xbf16>
    %177 = arith.extf %176 : vector<8x128xbf16> to vector<8x128xf32>
    %178 = arith.truncf %168 : vector<8x32xf32> to vector<8x32xbf16>
    %cst_44 = arith.constant dense<0.000000e+00> : vector<8x128xf32>
    %179 = tpu.matmul %178, %3, %cst_44 {dimension_numbers = #tpu.dot_dimension_numbers<[1], [0], [0], [1], [0, 0, 1, 1], [], []>} : vector<8x32xbf16>, vector<32x128xbf16>, vector<8x128xf32> -> vector<8x128xf32>
    %180 = arith.addf %177, %179 : vector<8x128xf32>
    %181 = vector.extract_strided_slice %180 {offsets = [0, 0], sizes = [8, 96], strides = [1, 1]} : vector<8x128xf32> to vector<8x96xf32>
    %182 = arith.negf %181 : vector<8x96xf32>
    %183 = math.exp %182 : vector<8x96xf32>
    %cst_45 = arith.constant 1.000000e+00 : f32
    %184 = vector.broadcast %cst_45 : f32 to vector<8x96xf32>
    %185 = arith.addf %184, %183 : vector<8x96xf32>
    %186 = arith.divf %184, %185 : vector<8x96xf32>
    %187 = vector.extract_strided_slice %180 {offsets = [0, 96], sizes = [8, 32], strides = [1, 1]} : vector<8x128xf32> to vector<8x32xf32>
    %188 = math.tanh %187 : vector<8x32xf32>
    %189 = vector.extract_strided_slice %186 {offsets = [0, 32], sizes = [8, 32], strides = [1, 1]} : vector<8x96xf32> to vector<8x32xf32>
    %190 = arith.mulf %189, %165 : vector<8x32xf32>
    %191 = vector.extract_strided_slice %186 {offsets = [0, 0], sizes = [8, 32], strides = [1, 1]} : vector<8x96xf32> to vector<8x32xf32>
    %192 = arith.mulf %191, %188 : vector<8x32xf32>
    %193 = arith.addf %190, %192 : vector<8x32xf32>
    %194 = vector.extract_strided_slice %186 {offsets = [0, 64], sizes = [8, 32], strides = [1, 1]} : vector<8x96xf32> to vector<8x32xf32>
    %195 = math.tanh %193 : vector<8x32xf32>
    %196 = arith.mulf %194, %195 : vector<8x32xf32>
    %197 = arith.truncf %196 : vector<8x32xf32> to vector<8x32xbf16>
    %198 = arith.index_cast %c6_i32 : i32 to index
    %c0_46 = arith.constant 0 : index
    %c0_47 = arith.constant 0 : index
    %199 = vector.load %arg6[%198, %c0_46, %c0_47] : memref<8x8x32xbf16, #tpu.memory_space<vmem>>, vector<1x8x32xbf16>
    %200 = vector.shape_cast %199 : vector<1x8x32xbf16> to vector<8x32xbf16>
    %201 = vector.shape_cast %197 : vector<8x32xbf16> to vector<1x8x32xbf16>
    tpu.vector_store %arg6[%198, %c0_46, %c0_47], %201 {strides = array<i32>} : memref<8x8x32xbf16, #tpu.memory_space<vmem>>, vector<1x8x32xbf16>,
    %c7_i32 = arith.constant 7 : i32
    %202 = arith.index_cast %c7_i32 : i32 to index
    %c0_48 = arith.constant 0 : index
    %c0_49 = arith.constant 0 : index
    %203 = vector.load %arg2[%202, %c0_48, %c0_49] : memref<8x8x128xbf16, #tpu.memory_space<vmem>>, vector<1x8x128xbf16>
    %204 = vector.shape_cast %203 : vector<1x8x128xbf16> to vector<8x128xbf16>
    %205 = arith.extf %204 : vector<8x128xbf16> to vector<8x128xf32>
    %206 = arith.truncf %196 : vector<8x32xf32> to vector<8x32xbf16>
    %cst_50 = arith.constant dense<0.000000e+00> : vector<8x128xf32>
    %207 = tpu.matmul %206, %3, %cst_50 {dimension_numbers = #tpu.dot_dimension_numbers<[1], [0], [0], [1], [0, 0, 1, 1], [], []>} : vector<8x32xbf16>, vector<32x128xbf16>, vector<8x128xf32> -> vector<8x128xf32>
    %208 = arith.addf %205, %207 : vector<8x128xf32>
    %209 = vector.extract_strided_slice %208 {offsets = [0, 0], sizes = [8, 96], strides = [1, 1]} : vector<8x128xf32> to vector<8x96xf32>
    %210 = arith.negf %209 : vector<8x96xf32>
    %211 = math.exp %210 : vector<8x96xf32>
    %cst_51 = arith.constant 1.000000e+00 : f32
    %212 = vector.broadcast %cst_51 : f32 to vector<8x96xf32>
    %213 = arith.addf %212, %211 : vector<8x96xf32>
    %214 = arith.divf %212, %213 : vector<8x96xf32>
    %215 = vector.extract_strided_slice %208 {offsets = [0, 96], sizes = [8, 32], strides = [1, 1]} : vector<8x128xf32> to vector<8x32xf32>
    %216 = math.tanh %215 : vector<8x32xf32>
    %217 = vector.extract_strided_slice %214 {offsets = [0, 32], sizes = [8, 32], strides = [1, 1]} : vector<8x96xf32> to vector<8x32xf32>
    %218 = arith.mulf %217, %193 : vector<8x32xf32>
    %219 = vector.extract_strided_slice %214 {offsets = [0, 0], sizes = [8, 32], strides = [1, 1]} : vector<8x96xf32> to vector<8x32xf32>
    %220 = arith.mulf %219, %216 : vector<8x32xf32>
    %221 = arith.addf %218, %220 : vector<8x32xf32>
    %222 = vector.extract_strided_slice %214 {offsets = [0, 64], sizes = [8, 32], strides = [1, 1]} : vector<8x96xf32> to vector<8x32xf32>
    %223 = math.tanh %221 : vector<8x32xf32>
    %224 = arith.mulf %222, %223 : vector<8x32xf32>
    %225 = arith.truncf %224 : vector<8x32xf32> to vector<8x32xbf16>
    %226 = arith.index_cast %c7_i32 : i32 to index
    %c0_52 = arith.constant 0 : index
    %c0_53 = arith.constant 0 : index
    %227 = vector.load %arg6[%226, %c0_52, %c0_53] : memref<8x8x32xbf16, #tpu.memory_space<vmem>>, vector<1x8x32xbf16>
    %228 = vector.shape_cast %227 : vector<1x8x32xbf16> to vector<8x32xbf16>
    %229 = vector.shape_cast %225 : vector<8x32xbf16> to vector<1x8x32xbf16>
    tpu.vector_store %arg6[%226, %c0_52, %c0_53], %229 {strides = array<i32>} : memref<8x8x32xbf16, #tpu.memory_space<vmem>>, vector<1x8x32xbf16>,
    %c8_i32 = arith.constant 8 : i32
    %c0_54 = arith.constant 0 : index
    %c0_55 = arith.constant 0 : index
    %230 = vector.load %arg7[%c0_54, %c0_55] : memref<8x32xf32, #tpu.memory_space<vmem>>, vector<8x32xf32>
    tpu.vector_store %arg7[%c0_54, %c0_55], %224 {strides = array<i32>} : memref<8x32xf32, #tpu.memory_space<vmem>>, vector<8x32xf32>,
    %c0_56 = arith.constant 0 : index
    %c0_57 = arith.constant 0 : index
    %231 = vector.load %arg8[%c0_56, %c0_57] : memref<8x32xf32, #tpu.memory_space<vmem>>, vector<8x32xf32>
    tpu.vector_store %arg8[%c0_56, %c0_57], %221 {strides = array<i32>} : memref<8x32xf32, #tpu.memory_space<vmem>>, vector<8x32xf32>,
    return
  }
  func.func @transform_0(%arg0: i32, %arg1: i32) -> (i32, i32, i32) {
    %c0_i32 = arith.constant 0 : i32
    %c0_i32_0 = arith.constant 0 : i32
    return %arg1, %arg0, %c0_i32 : i32, i32, i32
  }
  func.func @transform_1(%arg0: i32, %arg1: i32) -> (i32, i32) {
    %c0_i32 = arith.constant 0 : i32
    %c0_i32_0 = arith.constant 0 : i32
    %c0_i32_1 = arith.constant 0 : i32
    return %c0_i32, %c0_i32_0 : i32, i32
  }
  func.func @transform_2(%arg0: i32, %arg1: i32) -> (i32, i32) {
    %c0_i32 = arith.constant 0 : i32
    %c0_i32_0 = arith.constant 0 : i32
    return %arg0, %c0_i32 : i32, i32
  }
  func.func @transform_3(%arg0: i32, %arg1: i32) -> (i32, i32) {
    %c0_i32 = arith.constant 0 : i32
    %c0_i32_0 = arith.constant 0 : i32
    return %arg0, %c0_i32 : i32, i32
  }
  func.func @transform_4(%arg0: i32, %arg1: i32) -> (i32, i32, i32) {
    %c0_i32 = arith.constant 0 : i32
    %c0_i32_0 = arith.constant 0 : i32
    return %arg1, %arg0, %c0_i32 : i32, i32, i32
  }
  func.func @transform_5(%arg0: i32, %arg1: i32) -> (i32, i32) {
    %c0_i32 = arith.constant 0 : i32
    %c0_i32_0 = arith.constant 0 : i32
    return %arg0, %c0_i32 : i32, i32
  }
  func.func @transform_6(%arg0: i32, %arg1: i32) -> (i32, i32) {
    %c0_i32 = arith.constant 0 : i32
    %c0_i32_0 = arith.constant 0 : i32
    return %arg0, %c0_i32 : i32, i32
  }
}

module attributes {stable_mosaic.version = 11 : i64} {
  func.func @_matmul_bias_kernel(%arg0: i32, %arg1: i32, %arg2: i32, %arg3: memref<64x128xbf16, #tpu.memory_space<vmem>>, %arg4: memref<128x128xbf16, #tpu.memory_space<vmem>>, %arg5: memref<1x128xf32, #tpu.memory_space<vmem>>, %arg6: memref<64x128xf32, #tpu.memory_space<vmem>>, %arg7: memref<64x128xf32, #tpu.memory_space<vmem>>) attributes {dimension_semantics = [#tpu.dimension_semantics<parallel>, #tpu.dimension_semantics<parallel>, #tpu.dimension_semantics<arbitrary>], iteration_bounds = array<i64: 1, 1, 1>, scalar_prefetch = 0 : i64, scratch_operands = 1 : i64, tpu.core_type = #tpu.core_type<tc>, window_params = [{transform_indices = @transform_0, window_bounds = array<i64: 64, 128>}, {transform_indices = @transform_1, window_bounds = array<i64: 128, 128>}, {transform_indices = @transform_2, window_bounds = array<i64: 1, 128>}, {transform_indices = @transform_3, window_bounds = array<i64: 64, 128>}]} {
    %c0_i32 = arith.constant 0 : i32
    %0 = arith.cmpi eq, %arg2, %c0_i32 : i32
    %1 = arith.extui %0 : i1 to i32
    %c0_i32_0 = arith.constant 0 : i32
    %2 = arith.cmpi ne, %1, %c0_i32_0 : i32
    scf.if %2 {
      %cst_10 = arith.constant 0.000000e+00 : f32
      %12 = vector.broadcast %cst_10 : f32 to vector<64x128xf32>
      %c0_11 = arith.constant 0 : index
      %c0_12 = arith.constant 0 : index
      %13 = vector.load %arg7[%c0_11, %c0_12] : memref<64x128xf32, #tpu.memory_space<vmem>>, vector<64x128xf32>
      tpu.vector_store %arg7[%c0_11, %c0_12], %12 {strides = array<i32>} : memref<64x128xf32, #tpu.memory_space<vmem>>, vector<64x128xf32>,
    } else {
    }
    %c0 = arith.constant 0 : index
    %c0_1 = arith.constant 0 : index
    %3 = vector.load %arg7[%c0, %c0_1] : memref<64x128xf32, #tpu.memory_space<vmem>>, vector<64x128xf32>
    %c0_2 = arith.constant 0 : index
    %c0_3 = arith.constant 0 : index
    %4 = vector.load %arg3[%c0_2, %c0_3] : memref<64x128xbf16, #tpu.memory_space<vmem>>, vector<64x128xbf16>
    %c0_4 = arith.constant 0 : index
    %c0_5 = arith.constant 0 : index
    %5 = vector.load %arg4[%c0_4, %c0_5] : memref<128x128xbf16, #tpu.memory_space<vmem>>, vector<128x128xbf16>
    %cst = arith.constant dense<0.000000e+00> : vector<64x128xf32>
    %6 = tpu.matmul %4, %5, %cst {dimension_numbers = #tpu.dot_dimension_numbers<[1], [0], [0], [1], [0, 0, 1, 1], [], []>} : vector<64x128xbf16>, vector<128x128xbf16>, vector<64x128xf32> -> vector<64x128xf32>
    %7 = arith.addf %3, %6 : vector<64x128xf32>
    %c0_6 = arith.constant 0 : index
    %c0_7 = arith.constant 0 : index
    %8 = vector.load %arg7[%c0_6, %c0_7] : memref<64x128xf32, #tpu.memory_space<vmem>>, vector<64x128xf32>
    tpu.vector_store %arg7[%c0_6, %c0_7], %7 {strides = array<i32>} : memref<64x128xf32, #tpu.memory_space<vmem>>, vector<64x128xf32>,
    %c0_i32_8 = arith.constant 0 : i32
    %9 = arith.cmpi eq, %arg2, %c0_i32_8 : i32
    %10 = arith.extui %9 : i1 to i32
    %c0_i32_9 = arith.constant 0 : i32
    %11 = arith.cmpi ne, %10, %c0_i32_9 : i32
    scf.if %11 {
      %c0_10 = arith.constant 0 : index
      %c0_11 = arith.constant 0 : index
      %12 = vector.load %arg7[%c0_10, %c0_11] : memref<64x128xf32, #tpu.memory_space<vmem>>, vector<64x128xf32>
      %c0_12 = arith.constant 0 : index
      %c0_13 = arith.constant 0 : index
      %13 = vector.load %arg5[%c0_12, %c0_13] : memref<1x128xf32, #tpu.memory_space<vmem>>, vector<1x128xf32>
      %14 = vector.broadcast %13 : vector<1x128xf32> to vector<64x128xf32>
      %15 = arith.addf %12, %14 : vector<64x128xf32>
      %c0_14 = arith.constant 0 : index
      %c0_15 = arith.constant 0 : index
      %16 = vector.load %arg6[%c0_14, %c0_15] : memref<64x128xf32, #tpu.memory_space<vmem>>, vector<64x128xf32>
      tpu.vector_store %arg6[%c0_14, %c0_15], %15 {strides = array<i32>} : memref<64x128xf32, #tpu.memory_space<vmem>>, vector<64x128xf32>,
    } else {
    }
    return
  }
  func.func @transform_0(%arg0: i32, %arg1: i32, %arg2: i32) -> (i32, i32) {
    %c0_i32 = arith.constant 0 : i32
    return %arg0, %arg2 : i32, i32
  }
  func.func @transform_1(%arg0: i32, %arg1: i32, %arg2: i32) -> (i32, i32) {
    %c0_i32 = arith.constant 0 : i32
    return %arg2, %arg1 : i32, i32
  }
  func.func @transform_2(%arg0: i32, %arg1: i32, %arg2: i32) -> (i32, i32) {
    %c0_i32 = arith.constant 0 : i32
    %c0_i32_0 = arith.constant 0 : i32
    return %c0_i32, %arg1 : i32, i32
  }
  func.func @transform_3(%arg0: i32, %arg1: i32, %arg2: i32) -> (i32, i32) {
    %c0_i32 = arith.constant 0 : i32
    return %arg0, %arg1 : i32, i32
  }
}

</mosaic_0001>

<llo_original>
// kernel: lstm_model_forward.5
$region0: #{lstm_model_forward.5}
  #allocation0 [shape = 'u32[]', space=smem, size = 0x4, offset = 0x4, fixed_abs, tag = 'smem constant byte address 0x4 - core index']
  #allocation1 [shape = 'u32[72,128]{1,0:T(1,128)}', space=vmem, size = 0x9000, scoped, tag = 'internal scratch']
  #allocation2 [shape = 'f32[64,128]{1,0:T(8,128)}', space=vmem, size = 0x8000, scoped, tag = 'scratch operand']
  %s0 = inlined_call_operand.vmem [shape: bf16[64,128], index: 0, kind: input, shape index: {}]
  %s1 = inlined_call_operand.vmem [shape: bf16[128,128], index: 1, kind: input, shape index: {}]
  %s2 = inlined_call_operand.vmem [shape: f32[1,128], index: 2, kind: input, shape index: {}]
  %s3 = inlined_call_operand.vmem [shape: bf16[64,128], index: 3, kind: output, shape index: {}]
  %s4 = sld [smem:[#allocation0]]
  $region30: #{lstm_model_forward.5} parent=0
    _
  %s6 = ssub.s32 1, %s4
  %s7 = scalar_select 0, %s6, %s4
  // Predicated region
  $region2: #{lstm_model_forward.5} parent=0 // pred_check
    _
  $region3: #{lstm_model_forward.5} parent=0 // pred_check_branch
    %9 = sbr.rel (0) target = $region5
  $region4: #{lstm_model_forward.5} parent=0 // pred_region
    _
  $region5: #{lstm_model_forward.5} parent=0 // pred_fallthru
    _
  // Predicated region
  $region6: #{lstm_model_forward.5} parent=0 // pred_check
    _
  $region7: #{lstm_model_forward.5} parent=0 // pred_check_branch
    %11 = sbr.rel (0) target = $region9
  $region8: #{lstm_model_forward.5} parent=0 // pred_region
    _
  $region9: #{lstm_model_forward.5} parent=0 // pred_fallthru
    _
  // Predicated region
  $region10: #{lstm_model_forward.5} parent=0 // pred_check
    _
  $region11: #{lstm_model_forward.5} parent=0 // pred_check_branch
    %13 = sbr.rel (0) target = $region13
  $region12: #{lstm_model_forward.5} parent=0 // pred_region
    _
  $region13: #{lstm_model_forward.5} parent=0 // pred_fallthru
    _
  %p14 = scmp.eq.s32.totalorder 0, 0
  // Predicated region
  $region14: #{lstm_model_forward.5} parent=0 // pred_check
    %p15 = pneg %p14
  $region15: #{lstm_model_forward.5} parent=0 // pred_check_branch
    %17 = sbr.rel (%p15) target = $region17
  $region16: #{lstm_model_forward.5} parent=0 // pred_region
    %18 = vst [vmem:[#allocation2] sm:$0xff] 0.0
    %19 = vst [vmem:[#allocation2 + $0x8] sm:$0xff] 0.0
    %20 = vst [vmem:[#allocation2 + $0x10] sm:$0xff] 0.0
    %21 = vst [vmem:[#allocation2 + $0x18] sm:$0xff] 0.0
    %22 = vst [vmem:[#allocation2 + $0x20] sm:$0xff] 0.0
    %23 = vst [vmem:[#allocation2 + $0x28] sm:$0xff] 0.0
    %24 = vst [vmem:[#allocation2 + $0x30] sm:$0xff] 0.0
    %25 = vst [vmem:[#allocation2 + $0x38] sm:$0xff] 0.0
  $region17: #{lstm_model_forward.5} parent=0 // pred_fallthru
    _
  %v26 = vld [vmem:[#allocation2] sm:$0xff]
  %v27 = vld [vmem:[#allocation2 + $0x8] sm:$0xff]
  %v28 = vld [vmem:[#allocation2 + $0x10] sm:$0xff]
  %v29 = vld [vmem:[#allocation2 + $0x18] sm:$0xff]
  %v30 = vld [vmem:[#allocation2 + $0x20] sm:$0xff]
  %v31 = vld [vmem:[#allocation2 + $0x28] sm:$0xff]
  %v32 = vld [vmem:[#allocation2 + $0x30] sm:$0xff]
  %v33 = vld [vmem:[#allocation2 + $0x38] sm:$0xff]
  %v34 = vld [vmem:[%s0] sm:$0xf]
  %v35 = vld [vmem:[%s0 + $0x4] sm:$0xf]
  %v36 = vld [vmem:[%s0 + $0x8] sm:$0xf]
  %v37 = vld [vmem:[%s0 + $0xc] sm:$0xf]
  %v38 = vld [vmem:[%s0 + $0x10] sm:$0xf]
  %v39 = vld [vmem:[%s0 + $0x14] sm:$0xf]
  %v40 = vld [vmem:[%s0 + $0x18] sm:$0xf]
  %v41 = vld [vmem:[%s0 + $0x1c] sm:$0xf]
  %v42 = vld [vmem:[%s1] sm:$0xf]
  %v43 = vld [vmem:[%s1 + $0x4] sm:$0xf]
  %v44 = vld [vmem:[%s1 + $0x8] sm:$0xf]
  %v45 = vld [vmem:[%s1 + $0xc] sm:$0xf]
  %v46 = vld [vmem:[%s1 + $0x10] sm:$0xf]
  %v47 = vld [vmem:[%s1 + $0x14] sm:$0xf]
  %v48 = vld [vmem:[%s1 + $0x18] sm:$0xf]
  %v49 = vld [vmem:[%s1 + $0x1c] sm:$0xf]
  %v50 = vld [vmem:[%s1 + $0x20] sm:$0xf]
  %v51 = vld [vmem:[%s1 + $0x24] sm:$0xf]
  %v52 = vld [vmem:[%s1 + $0x28] sm:$0xf]
  %v53 = vld [vmem:[%s1 + $0x2c] sm:$0xf]
  %v54 = vld [vmem:[%s1 + $0x30] sm:$0xf]
  %v55 = vld [vmem:[%s1 + $0x34] sm:$0xf]
  %v56 = vld [vmem:[%s1 + $0x38] sm:$0xf]
  %v57 = vld [vmem:[%s1 + $0x3c] sm:$0xf]
  %v66 = vunpack.c.l.b16 %v34
  %v67 = vunpack.c.l.b16 %v35
  %v68 = vunpack.c.l.b16 %v36
  %v69 = vunpack.c.l.b16 %v37
  %v70 = vunpack.c.l.b16 %v38
  %v71 = vunpack.c.l.b16 %v39
  %v72 = vunpack.c.l.b16 %v40
  %v73 = vunpack.c.l.b16 %v41
  %v74 = vpack.c.b16 %v67, %v66
  %v75 = vpack.c.b16 %v69, %v68
  %v76 = vpack.c.b16 %v71, %v70
  %v77 = vpack.c.b16 %v73, %v72
  %v98 = vunpack.c.l.b16 %v42
  %v99 = vunpack.c.l.b16 %v43
  %v100 = vunpack.c.l.b16 %v44
  %v101 = vunpack.c.l.b16 %v45
  %v102 = vunpack.c.l.b16 %v46
  %v103 = vunpack.c.l.b16 %v47
  %v104 = vunpack.c.l.b16 %v48
  %v105 = vunpack.c.l.b16 %v49
  %v106 = vunpack.c.l.b16 %v50
  %v107 = vunpack.c.l.b16 %v51
  %v108 = vunpack.c.l.b16 %v52
  %v109 = vunpack.c.l.b16 %v53
  %v110 = vunpack.c.l.b16 %v54
  %v111 = vunpack.c.l.b16 %v55
  %v112 = vunpack.c.l.b16 %v56
  %v113 = vunpack.c.l.b16 %v57
  %v114 = vpack.c.b16 %v99, %v98
  %v115 = vpack.c.b16 %v101, %v100
  %v116 = vpack.c.b16 %v103, %v102
  %v117 = vpack.c.b16 %v105, %v104
  %v118 = vpack.c.b16 %v107, %v106
  %v119 = vpack.c.b16 %v109, %v108
  %v120 = vpack.c.b16 %v111, %v110
  %v121 = vpack.c.b16 %v113, %v112
  %130 = vmatpush.bf16.msra.mxu0 %v121
  %131 = vmatpush.bf16.msra.mxu0 %v120
  %132 = vmatpush.bf16.msra.mxu0 %v119
  %133 = vmatpush.bf16.msra.mxu0 %v118
  %134 = vmatpush.bf16.msra.mxu0 %v117
  %135 = vmatpush.bf16.msra.mxu0 %v116
  %136 = vmatpush.bf16.msra.mxu0 %v115
  %137 = vmatpush.bf16.msra.mxu0 %v114
  %138 = vmatmul.bf16.gmra.mxu0 %v74
  %v139 = vpop.f32.mrf.mxu0
  %v140 = vadd.f32 0.0, %v139
  %v141 = vpop.f32.mrf.mxu0
  %v142 = vadd.f32 0.0, %v141
  %143 = vmatmul.bf16.gmra.mxu0 %v75
  %v144 = vpop.f32.mrf.mxu0
  %v145 = vadd.f32 0.0, %v144
  %v146 = vpop.f32.mrf.mxu0
  %v147 = vadd.f32 0.0, %v146
  %148 = vmatmul.bf16.gmra.mxu0 %v76
  %v149 = vpop.f32.mrf.mxu0
  %v150 = vadd.f32 0.0, %v149
  %v151 = vpop.f32.mrf.mxu0
  %v152 = vadd.f32 0.0, %v151
  %153 = vmatmul.bf16.gmra.mxu0 %v77
  %v154 = vpop.f32.mrf.mxu0
  %v155 = vadd.f32 0.0, %v154
  %v156 = vpop.f32.mrf.mxu0
  %v157 = vadd.f32 0.0, %v156
  %158 = vdwg.mxu0
  %v159 = vadd.f32 %v26, %v140
  %v160 = vadd.f32 %v27, %v142
  %v161 = vadd.f32 %v28, %v145
  %v162 = vadd.f32 %v29, %v147
  %v163 = vadd.f32 %v30, %v150
  %v164 = vadd.f32 %v31, %v152
  %v165 = vadd.f32 %v32, %v155
  %v166 = vadd.f32 %v33, %v157
  %167 = vst [vmem:[#allocation2] sm:$0xff] %v159
  %168 = vst [vmem:[#allocation2 + $0x8] sm:$0xff] %v160
  %169 = vst [vmem:[#allocation2 + $0x10] sm:$0xff] %v161
  %170 = vst [vmem:[#allocation2 + $0x18] sm:$0xff] %v162
  %171 = vst [vmem:[#allocation2 + $0x20] sm:$0xff] %v163
  %172 = vst [vmem:[#allocation2 + $0x28] sm:$0xff] %v164
  %173 = vst [vmem:[#allocation2 + $0x30] sm:$0xff] %v165
  %174 = vst [vmem:[#allocation2 + $0x38] sm:$0xff] %v166
  // Predicated region
  $region18: #{lstm_model_forward.5} parent=0 // pred_check
    %p175 = pneg %p14
  $region19: #{lstm_model_forward.5} parent=0 // pred_check_branch
    %177 = sbr.rel (%p175) target = $region21
  $region20: #{lstm_model_forward.5} parent=0 // pred_region
    %v178 = vld [vmem:[#allocation2] sm:$0xff]
    %v179 = vld [vmem:[#allocation2 + $0x8] sm:$0xff]
    %v180 = vld [vmem:[#allocation2 + $0x10] sm:$0xff]
    %v181 = vld [vmem:[#allocation2 + $0x18] sm:$0xff]
    %v182 = vld [vmem:[#allocation2 + $0x20] sm:$0xff]
    %v183 = vld [vmem:[#allocation2 + $0x28] sm:$0xff]
    %v184 = vld [vmem:[#allocation2 + $0x30] sm:$0xff]
    %v185 = vld [vmem:[#allocation2 + $0x38] sm:$0xff]
    %v186 = vld [vmem:[%s2] sm:$0x1]
    %v188 = vperm.slane %v186, 0
    %v190 = vadd.f32 %v178, %v188
    %v191 = vadd.f32 %v179, %v188
    %v192 = vadd.f32 %v180, %v188
    %v193 = vadd.f32 %v181, %v188
    %v194 = vadd.f32 %v182, %v188
    %v195 = vadd.f32 %v183, %v188
    %v196 = vadd.f32 %v184, %v188
    %v197 = vadd.f32 %v185, %v188
    %v198 = vpack.c.bf16 %v190, %v190
    %v199 = vpack.c.bf16 %v191, %v191
    %v200 = vpack.c.bf16 %v192, %v192
    %v201 = vpack.c.bf16 %v193, %v193
    %v202 = vpack.c.bf16 %v194, %v194
    %v203 = vpack.c.bf16 %v195, %v195
    %v204 = vpack.c.bf16 %v196, %v196
    %v205 = vpack.c.bf16 %v197, %v197
    %206 = vst [vmem:[%s3] sm:$0xf] %v198
    %207 = vst [vmem:[%s3 + $0x4] sm:$0xf] %v199
    %208 = vst [vmem:[%s3 + $0x8] sm:$0xf] %v200
    %209 = vst [vmem:[%s3 + $0xc] sm:$0xf] %v201
    %210 = vst [vmem:[%s3 + $0x10] sm:$0xf] %v202
    %211 = vst [vmem:[%s3 + $0x14] sm:$0xf] %v203
    %212 = vst [vmem:[%s3 + $0x18] sm:$0xf] %v204
    %213 = vst [vmem:[%s3 + $0x1c] sm:$0xf] %v205
  $region21: #{lstm_model_forward.5} parent=0 // pred_fallthru
    _
  // Predicated region
  $region22: #{lstm_model_forward.5} parent=0 // pred_check
    _
  $region23: #{lstm_model_forward.5} parent=0 // pred_check_branch
    %215 = sbr.rel (0) target = $region25
  $region24: #{lstm_model_forward.5} parent=0 // pred_region
    _
  $region25: #{lstm_model_forward.5} parent=0 // pred_fallthru
    _
  // Predicated region
  $region26: #{lstm_model_forward.5} parent=0 // pred_check
    _
  $region27: #{lstm_model_forward.5} parent=0 // pred_check_branch
    %217 = sbr.rel (0) target = $region29
  $region28: #{lstm_model_forward.5} parent=0 // pred_region
    _
  $region29: #{lstm_model_forward.5} parent=0 // pred_fallthru
    _

// kernel: lstm_model_forward.9
$region0: #{lstm_model_forward.9}
  #allocation0 [shape = 'u32[]', space=smem, size = 0x4, offset = 0x4, fixed_abs, tag = 'smem constant byte address 0x4 - core index']
  #allocation1 [shape = 'u32[72,128]{1,0:T(1,128)}', space=vmem, size = 0x9000, scoped, tag = 'internal scratch']
  #allocation2 [shape = 'f32[64,128]{1,0:T(8,128)}', space=vmem, size = 0x8000, scoped, tag = 'scratch operand']
  %s0 = inlined_call_operand.vmem [shape: bf16[64,128], index: 0, kind: input, shape index: {}]
  %s1 = inlined_call_operand.vmem [shape: bf16[128,128], index: 1, kind: input, shape index: {}]
  %s2 = inlined_call_operand.vmem [shape: f32[1,128], index: 2, kind: input, shape index: {}]
  %s3 = inlined_call_operand.vmem [shape: f32[64,128], index: 3, kind: output, shape index: {}]
  %s4 = sld [smem:[#allocation0]]
  $region30: #{lstm_model_forward.9} parent=0
    _
  %s6 = ssub.s32 1, %s4
  %s7 = scalar_select 0, %s6, %s4
  // Predicated region
  $region2: #{lstm_model_forward.9} parent=0 // pred_check
    _
  $region3: #{lstm_model_forward.9} parent=0 // pred_check_branch
    %9 = sbr.rel (0) target = $region5
  $region4: #{lstm_model_forward.9} parent=0 // pred_region
    _
  $region5: #{lstm_model_forward.9} parent=0 // pred_fallthru
    _
  // Predicated region
  $region6: #{lstm_model_forward.9} parent=0 // pred_check
    _
  $region7: #{lstm_model_forward.9} parent=0 // pred_check_branch
    %11 = sbr.rel (0) target = $region9
  $region8: #{lstm_model_forward.9} parent=0 // pred_region
    _
  $region9: #{lstm_model_forward.9} parent=0 // pred_fallthru
    _
  // Predicated region
  $region10: #{lstm_model_forward.9} parent=0 // pred_check
    _
  $region11: #{lstm_model_forward.9} parent=0 // pred_check_branch
    %13 = sbr.rel (0) target = $region13
  $region12: #{lstm_model_forward.9} parent=0 // pred_region
    _
  $region13: #{lstm_model_forward.9} parent=0 // pred_fallthru
    _
  %p14 = scmp.eq.s32.totalorder 0, 0
  // Predicated region
  $region14: #{lstm_model_forward.9} parent=0 // pred_check
    %p15 = pneg %p14
  $region15: #{lstm_model_forward.9} parent=0 // pred_check_branch
    %17 = sbr.rel (%p15) target = $region17
  $region16: #{lstm_model_forward.9} parent=0 // pred_region
    %18 = vst [vmem:[#allocation2] sm:$0xff] 0.0
    %19 = vst [vmem:[#allocation2 + $0x8] sm:$0xff] 0.0
    %20 = vst [vmem:[#allocation2 + $0x10] sm:$0xff] 0.0
    %21 = vst [vmem:[#allocation2 + $0x18] sm:$0xff] 0.0
    %22 = vst [vmem:[#allocation2 + $0x20] sm:$0xff] 0.0
    %23 = vst [vmem:[#allocation2 + $0x28] sm:$0xff] 0.0
    %24 = vst [vmem:[#allocation2 + $0x30] sm:$0xff] 0.0
    %25 = vst [vmem:[#allocation2 + $0x38] sm:$0xff] 0.0
  $region17: #{lstm_model_forward.9} parent=0 // pred_fallthru
    _
  %v26 = vld [vmem:[#allocation2] sm:$0xff]
  %v27 = vld [vmem:[#allocation2 + $0x8] sm:$0xff]
  %v28 = vld [vmem:[#allocation2 + $0x10] sm:$0xff]
  %v29 = vld [vmem:[#allocation2 + $0x18] sm:$0xff]
  %v30 = vld [vmem:[#allocation2 + $0x20] sm:$0xff]
  %v31 = vld [vmem:[#allocation2 + $0x28] sm:$0xff]
  %v32 = vld [vmem:[#allocation2 + $0x30] sm:$0xff]
  %v33 = vld [vmem:[#allocation2 + $0x38] sm:$0xff]
  %v34 = vld [vmem:[%s0] sm:$0xf]
  %v35 = vld [vmem:[%s0 + $0x4] sm:$0xf]
  %v36 = vld [vmem:[%s0 + $0x8] sm:$0xf]
  %v37 = vld [vmem:[%s0 + $0xc] sm:$0xf]
  %v38 = vld [vmem:[%s0 + $0x10] sm:$0xf]
  %v39 = vld [vmem:[%s0 + $0x14] sm:$0xf]
  %v40 = vld [vmem:[%s0 + $0x18] sm:$0xf]
  %v41 = vld [vmem:[%s0 + $0x1c] sm:$0xf]
  %v42 = vld [vmem:[%s1] sm:$0xf]
  %v43 = vld [vmem:[%s1 + $0x4] sm:$0xf]
  %v44 = vld [vmem:[%s1 + $0x8] sm:$0xf]
  %v45 = vld [vmem:[%s1 + $0xc] sm:$0xf]
  %v46 = vld [vmem:[%s1 + $0x10] sm:$0xf]
  %v47 = vld [vmem:[%s1 + $0x14] sm:$0xf]
  %v48 = vld [vmem:[%s1 + $0x18] sm:$0xf]
  %v49 = vld [vmem:[%s1 + $0x1c] sm:$0xf]
  %v50 = vld [vmem:[%s1 + $0x20] sm:$0xf]
  %v51 = vld [vmem:[%s1 + $0x24] sm:$0xf]
  %v52 = vld [vmem:[%s1 + $0x28] sm:$0xf]
  %v53 = vld [vmem:[%s1 + $0x2c] sm:$0xf]
  %v54 = vld [vmem:[%s1 + $0x30] sm:$0xf]
  %v55 = vld [vmem:[%s1 + $0x34] sm:$0xf]
  %v56 = vld [vmem:[%s1 + $0x38] sm:$0xf]
  %v57 = vld [vmem:[%s1 + $0x3c] sm:$0xf]
  %v66 = vunpack.c.l.b16 %v34
  %v67 = vunpack.c.l.b16 %v35
  %v68 = vunpack.c.l.b16 %v36
  %v69 = vunpack.c.l.b16 %v37
  %v70 = vunpack.c.l.b16 %v38
  %v71 = vunpack.c.l.b16 %v39
  %v72 = vunpack.c.l.b16 %v40
  %v73 = vunpack.c.l.b16 %v41
  %v74 = vpack.c.b16 %v67, %v66
  %v75 = vpack.c.b16 %v69, %v68
  %v76 = vpack.c.b16 %v71, %v70
  %v77 = vpack.c.b16 %v73, %v72
  %v98 = vunpack.c.l.b16 %v42
  %v99 = vunpack.c.l.b16 %v43
  %v100 = vunpack.c.l.b16 %v44
  %v101 = vunpack.c.l.b16 %v45
  %v102 = vunpack.c.l.b16 %v46
  %v103 = vunpack.c.l.b16 %v47
  %v104 = vunpack.c.l.b16 %v48
  %v105 = vunpack.c.l.b16 %v49
  %v106 = vunpack.c.l.b16 %v50
  %v107 = vunpack.c.l.b16 %v51
  %v108 = vunpack.c.l.b16 %v52
  %v109 = vunpack.c.l.b16 %v53
  %v110 = vunpack.c.l.b16 %v54
  %v111 = vunpack.c.l.b16 %v55
  %v112 = vunpack.c.l.b16 %v56
  %v113 = vunpack.c.l.b16 %v57
  %v114 = vpack.c.b16 %v99, %v98
  %v115 = vpack.c.b16 %v101, %v100
  %v116 = vpack.c.b16 %v103, %v102
  %v117 = vpack.c.b16 %v105, %v104
  %v118 = vpack.c.b16 %v107, %v106
  %v119 = vpack.c.b16 %v109, %v108
  %v120 = vpack.c.b16 %v111, %v110
  %v121 = vpack.c.b16 %v113, %v112
  %130 = vmatpush.bf16.msra.mxu0 %v121
  %131 = vmatpush.bf16.msra.mxu0 %v120
  %132 = vmatpush.bf16.msra.mxu0 %v119
  %133 = vmatpush.bf16.msra.mxu0 %v118
  %134 = vmatpush.bf16.msra.mxu0 %v117
  %135 = vmatpush.bf16.msra.mxu0 %v116
  %136 = vmatpush.bf16.msra.mxu0 %v115
  %137 = vmatpush.bf16.msra.mxu0 %v114
  %138 = vmatmul.bf16.gmra.mxu0 %v74
  %v139 = vpop.f32.mrf.mxu0
  %v140 = vadd.f32 0.0, %v139
  %v141 = vpop.f32.mrf.mxu0
  %v142 = vadd.f32 0.0, %v141
  %143 = vmatmul.bf16.gmra.mxu0 %v75
  %v144 = vpop.f32.mrf.mxu0
  %v145 = vadd.f32 0.0, %v144
  %v146 = vpop.f32.mrf.mxu0
  %v147 = vadd.f32 0.0, %v146
  %148 = vmatmul.bf16.gmra.mxu0 %v76
  %v149 = vpop.f32.mrf.mxu0
  %v150 = vadd.f32 0.0, %v149
  %v151 = vpop.f32.mrf.mxu0
  %v152 = vadd.f32 0.0, %v151
  %153 = vmatmul.bf16.gmra.mxu0 %v77
  %v154 = vpop.f32.mrf.mxu0
  %v155 = vadd.f32 0.0, %v154
  %v156 = vpop.f32.mrf.mxu0
  %v157 = vadd.f32 0.0, %v156
  %158 = vdwg.mxu0
  %v159 = vadd.f32 %v26, %v140
  %v160 = vadd.f32 %v27, %v142
  %v161 = vadd.f32 %v28, %v145
  %v162 = vadd.f32 %v29, %v147
  %v163 = vadd.f32 %v30, %v150
  %v164 = vadd.f32 %v31, %v152
  %v165 = vadd.f32 %v32, %v155
  %v166 = vadd.f32 %v33, %v157
  %167 = vst [vmem:[#allocation2] sm:$0xff] %v159
  %168 = vst [vmem:[#allocation2 + $0x8] sm:$0xff] %v160
  %169 = vst [vmem:[#allocation2 + $0x10] sm:$0xff] %v161
  %170 = vst [vmem:[#allocation2 + $0x18] sm:$0xff] %v162
  %171 = vst [vmem:[#allocation2 + $0x20] sm:$0xff] %v163
  %172 = vst [vmem:[#allocation2 + $0x28] sm:$0xff] %v164
  %173 = vst [vmem:[#allocation2 + $0x30] sm:$0xff] %v165
  %174 = vst [vmem:[#allocation2 + $0x38] sm:$0xff] %v166
  // Predicated region
  $region18: #{lstm_model_forward.9} parent=0 // pred_check
    %p175 = pneg %p14
  $region19: #{lstm_model_forward.9} parent=0 // pred_check_branch
    %177 = sbr.rel (%p175) target = $region21
  $region20: #{lstm_model_forward.9} parent=0 // pred_region
    %v178 = vld [vmem:[#allocation2] sm:$0xff]
    %v179 = vld [vmem:[#allocation2 + $0x8] sm:$0xff]
    %v180 = vld [vmem:[#allocation2 + $0x10] sm:$0xff]
    %v181 = vld [vmem:[#allocation2 + $0x18] sm:$0xff]
    %v182 = vld [vmem:[#allocation2 + $0x20] sm:$0xff]
    %v183 = vld [vmem:[#allocation2 + $0x28] sm:$0xff]
    %v184 = vld [vmem:[#allocation2 + $0x30] sm:$0xff]
    %v185 = vld [vmem:[#allocation2 + $0x38] sm:$0xff]
    %v186 = vld [vmem:[%s2] sm:$0x1]
    %v188 = vperm.slane %v186, 0
    %v190 = vadd.f32 %v178, %v188
    %v191 = vadd.f32 %v179, %v188
    %v192 = vadd.f32 %v180, %v188
    %v193 = vadd.f32 %v181, %v188
    %v194 = vadd.f32 %v182, %v188
    %v195 = vadd.f32 %v183, %v188
    %v196 = vadd.f32 %v184, %v188
    %v197 = vadd.f32 %v185, %v188
    %198 = vst [vmem:[%s3] sm:$0xff] %v190
    %199 = vst [vmem:[%s3 + $0x8] sm:$0xff] %v191
    %200 = vst [vmem:[%s3 + $0x10] sm:$0xff] %v192
    %201 = vst [vmem:[%s3 + $0x18] sm:$0xff] %v193
    %202 = vst [vmem:[%s3 + $0x20] sm:$0xff] %v194
    %203 = vst [vmem:[%s3 + $0x28] sm:$0xff] %v195
    %204 = vst [vmem:[%s3 + $0x30] sm:$0xff] %v196
    %205 = vst [vmem:[%s3 + $0x38] sm:$0xff] %v197
  $region21: #{lstm_model_forward.9} parent=0 // pred_fallthru
    _
  // Predicated region
  $region22: #{lstm_model_forward.9} parent=0 // pred_check
    _
  $region23: #{lstm_model_forward.9} parent=0 // pred_check_branch
    %207 = sbr.rel (0) target = $region25
  $region24: #{lstm_model_forward.9} parent=0 // pred_region
    _
  $region25: #{lstm_model_forward.9} parent=0 // pred_fallthru
    _
  // Predicated region
  $region26: #{lstm_model_forward.9} parent=0 // pred_check
    _
  $region27: #{lstm_model_forward.9} parent=0 // pred_check_branch
    %209 = sbr.rel (0) target = $region29
  $region28: #{lstm_model_forward.9} parent=0 // pred_region
    _
  $region29: #{lstm_model_forward.9} parent=0 // pred_fallthru
    _

// kernel: lstm_model_forward.6
$region0: #{lstm_model_forward.6}
  #allocation0 [shape = 'u32[]', space=smem, size = 0x4, offset = 0x4, fixed_abs, tag = 'smem constant byte address 0x4 - core index']
  #allocation1 [shape = 'u32[72,128]{1,0:T(1,128)}', space=vmem, size = 0x9000, scoped, tag = 'internal scratch']
  %s0 = inlined_call_operand.vmem [shape: bf16[8,8,128], index: 0, kind: input, shape index: {}]
  %s1 = inlined_call_operand.vmem [shape: bf16[32,128], index: 1, kind: input, shape index: {}]
  %s2 = inlined_call_operand.vmem [shape: f32[8,32], index: 2, kind: input, shape index: {}, may-alias: {2,3}]
  %s3 = inlined_call_operand.vmem [shape: f32[8,32], index: 3, kind: input, shape index: {}, may-alias: {2,3}]
  %s4 = inlined_call_operand.vmem [shape: bf16[8,8,32], index: 4, kind: output, shape index: {0}]
  %s5 = inlined_call_operand.vmem [shape: f32[8,32], index: 5, kind: output, shape index: {1}]
  %s6 = inlined_call_operand.vmem [shape: f32[8,32], index: 6, kind: output, shape index: {2}]
  %7 = xla_tuple %s4, %s5, %s6
  %s8 = sld [smem:[#allocation0]]
  $region46: #{lstm_model_forward.6} parent=0
    _
  %s10 = ssub.s32 1, %s8
  %s11 = scalar_select 0, %s10, %s8
  // Predicated region
  $region2: #{lstm_model_forward.6} parent=0 // pred_check
    _
  $region3: #{lstm_model_forward.6} parent=0 // pred_check_branch
    %13 = sbr.rel (0) target = $region5
  $region4: #{lstm_model_forward.6} parent=0 // pred_region
    _
  $region5: #{lstm_model_forward.6} parent=0 // pred_fallthru
    _
  // Predicated region
  $region6: #{lstm_model_forward.6} parent=0 // pred_check
    _
  $region7: #{lstm_model_forward.6} parent=0 // pred_check_branch
    %15 = sbr.rel (0) target = $region9
  $region8: #{lstm_model_forward.6} parent=0 // pred_region
    _
  $region9: #{lstm_model_forward.6} parent=0 // pred_fallthru
    _
  // Predicated region
  $region10: #{lstm_model_forward.6} parent=0 // pred_check
    _
  $region11: #{lstm_model_forward.6} parent=0 // pred_check_branch
    %17 = sbr.rel (0) target = $region13
  $region12: #{lstm_model_forward.6} parent=0 // pred_region
    _
  $region13: #{lstm_model_forward.6} parent=0 // pred_fallthru
    _
  // Predicated region
  $region14: #{lstm_model_forward.6} parent=0 // pred_check
    _
  $region15: #{lstm_model_forward.6} parent=0 // pred_check_branch
    %19 = sbr.rel (0) target = $region17
  $region16: #{lstm_model_forward.6} parent=0 // pred_region
    _
  $region17: #{lstm_model_forward.6} parent=0 // pred_fallthru
    _
  %p21 = scmp.eq.s32.totalorder 0, 0
  // Predicated region
  $region18: #{lstm_model_forward.6} parent=0 // pred_check
    %p22 = pneg %p21
  $region19: #{lstm_model_forward.6} parent=0 // pred_check_branch
    %24 = sbr.rel (%p22) target = $region21
  $region20: #{lstm_model_forward.6} parent=0 // pred_region
    %v25 = vld [vmem:[%s2] sm:$0xff]
    %vm26 = vcmask 261120
    %27 = vst.msk [vmem:[%s5] sm:$0xff] %vm26, %v25
    %v28 = vld [vmem:[%s3] sm:$0xff]
    %29 = vst.msk [vmem:[%s6] sm:$0xff] %vm26, %v28
  $region21: #{lstm_model_forward.6} parent=0 // pred_fallthru
    _
  %v30 = vld [vmem:[%s1] sm:$0xf]
  %v31 = vld [vmem:[%s1 + $0x4] sm:$0xf]
  %v32 = vld [vmem:[%s1 + $0x8] sm:$0xf]
  %v33 = vld [vmem:[%s1 + $0xc] sm:$0xf]
  %v34 = vld [vmem:[%s5] sm:$0xff]
  %v35 = vld [vmem:[%s6] sm:$0xff]
  %v36 = vld [vmem:[%s0] sm:$0xf]
  %v37 = vunpack.c.l.bf16 %v36
  %v38 = vpack.c.bf16 %v34, %v34
  %v43 = vunpack.c.l.b16 %v30
  %v44 = vunpack.c.l.b16 %v31
  %v45 = vunpack.c.l.b16 %v32
  %v46 = vunpack.c.l.b16 %v33
  %v47 = vpack.c.b16 %v44, %v43
  %v48 = vpack.c.b16 %v46, %v45
  %vm51 = vcmask 261120
  %v53 = vsel %vm51, %v38, 0
  %55 = vmatpush.bf16.msra.mxu0 0
  %56 = vmatpush.bf16.msra.mxu0 0
  %57 = vmatpush.bf16.msra.mxu0 0
  %58 = vmatpush.bf16.msra.mxu0 0
  %59 = vmatpush.bf16.msra.mxu0 0
  %60 = vmatpush.bf16.msra.mxu0 0
  %61 = vmatpush.bf16.msra.mxu0 %v48
  %62 = vmatpush.bf16.msra.mxu0 %v47
  %63 = vmatmul.bf16.gmra.mxu0 %v53
  %v64 = vpop.f32.mrf.mxu0
  %v65 = vadd.f32 0.0, %v64
  %v66 = vpop.f32.mrf.mxu0
  %67 = vdwg.mxu0
  %v68 = vadd.f32 %v37, %v65
  %v69 = vxor.u32 %v68, 2147483648
  %v70 = vmul.f32 %v69, 1.442695
  %v71 = vpow.pop %v70
  %v72 = vadd.f32 %v71, 1.0
  %v73 = vrcp.pop %v72
  %v74 = vmul.f32 %v72, %v73
  %v75 = vsub.f32 1.0, %v74
  %v76 = vmul.f32 %v73, %v75
  %v77 = vadd.f32 %v73, %v76
  %vm78 = vweird.f32 %v72
  %vm79 = vweird.f32 %v73
  %vm80 = vmor %vm78, %vm79
  %v81 = vsel %vm80, %v73, %v77
  %v82 = vand.u32 2147483647, %v72
  %vm83 = vcmp.eq.f32.partialorder %v82, 8.507059e+37
  %v84 = vand.u32 %v72, 2147483648
  %v85 = vor.u32 1.1754944e-38, %v84
  %v86 = vsel %vm83, %v85, %v81
  %v87 = vmul.f32 1.0, %v86
  %v88 = vtanh.pop %v68
  %90 = vrot.lane.b32.xlu0 %v35, 32
  %v91 = vpop.permute.xlu0 %90
  %v93 = vmul.f32 %v87, %v91
  %95 = vrot.lane.b32.xlu0 %v88, 32
  %v96 = vpop.permute.xlu0 %95
  %v98 = vmul.f32 %v87, %v96
  %100 = vrot.lane.b32.xlu0 %v98, 32
  %v101 = vpop.permute.xlu0 %100
  %v103 = vadd.f32 %v93, %v101
  %v104 = vtanh.pop %v103
  %106 = vrot.lane.b32.xlu0 %v104, 32
  %v107 = vpop.permute.xlu0 %106
  %v109 = vmul.f32 %v87, %v107
  %v110 = vpack.c.bf16 %v109, %v109
  %112 = vrot.lane.b32.xlu0 %v110, 64
  %v113 = vpop.permute.xlu0 %112
  %vm115 = vcmask 257024
  %116 = vst.msk [vmem:[%s4] sm:$0xf] %vm115, %v113
  %s117 = scalar_lea.vmem %s0, 4
  %v118 = vld [vmem:[%s117] sm:$0xf]
  %v119 = vunpack.c.l.bf16 %v118
  %v120 = vunpack.c.l.b16 %v110
  %v121 = vpack.c.b16 %v120, %v120
  %122 = vrot.lane.b32.xlu0 %v121, 64
  %v123 = vpop.permute.xlu0 %122
  %v125 = vsel %vm51, %v123, 0
  %127 = vmatpush.bf16.msra.mxu0 0
  %128 = vmatpush.bf16.msra.mxu0 0
  %129 = vmatpush.bf16.msra.mxu0 0
  %130 = vmatpush.bf16.msra.mxu0 0
  %131 = vmatpush.bf16.msra.mxu0 0
  %132 = vmatpush.bf16.msra.mxu0 0
  %133 = vmatpush.bf16.msra.mxu0 %v48
  %134 = vmatpush.bf16.msra.mxu0 %v47
  %135 = vmatmul.bf16.gmra.mxu0 %v125
  %v136 = vpop.f32.mrf.mxu0
  %v137 = vadd.f32 0.0, %v136
  %v138 = vpop.f32.mrf.mxu0
  %139 = vdwg.mxu0
  %v140 = vadd.f32 %v119, %v137
  %v141 = vxor.u32 %v140, 2147483648
  %v142 = vmul.f32 %v141, 1.442695
  %v143 = vpow.pop %v142
  %v144 = vadd.f32 %v143, 1.0
  %v145 = vrcp.pop %v144
  %v146 = vmul.f32 %v144, %v145
  %v147 = vsub.f32 1.0, %v146
  %v148 = vmul.f32 %v145, %v147
  %v149 = vadd.f32 %v145, %v148
  %vm150 = vweird.f32 %v144
  %vm151 = vweird.f32 %v145
  %vm152 = vmor %vm150, %vm151
  %v153 = vsel %vm152, %v145, %v149
  %v154 = vand.u32 2147483647, %v144
  %vm155 = vcmp.eq.f32.partialorder %v154, 8.507059e+37
  %v156 = vand.u32 %v144, 2147483648
  %v157 = vor.u32 1.1754944e-38, %v156
  %v158 = vsel %vm155, %v157, %v153
  %v159 = vmul.f32 1.0, %v158
  %v160 = vtanh.pop %v140
  %v161 = vmul.f32 %v159, %v103
  %163 = vrot.lane.b32.xlu0 %v160, 32
  %v164 = vpop.permute.xlu0 %163
  %v166 = vmul.f32 %v159, %v164
  %168 = vrot.lane.b32.xlu0 %v166, 32
  %v169 = vpop.permute.xlu0 %168
  %v171 = vadd.f32 %v161, %v169
  %v172 = vtanh.pop %v171
  %174 = vrot.lane.b32.xlu0 %v172, 32
  %v175 = vpop.permute.xlu0 %174
  %v177 = vmul.f32 %v159, %v175
  %v178 = vpack.c.bf16 %v177, %v177
  %180 = vrot.lane.b32.xlu0 %v178, 64
  %v181 = vpop.permute.xlu0 %180
  %s183 = scalar_lea.vmem %s4, 4
  %184 = vst.msk [vmem:[%s183] sm:$0xf] %vm115, %v181
  %s185 = scalar_lea.vmem %s0, 8
  %v186 = vld [vmem:[%s185] sm:$0xf]
  %v187 = vunpack.c.l.bf16 %v186
  %v188 = vunpack.c.l.b16 %v178
  %v189 = vpack.c.b16 %v188, %v188
  %190 = vrot.lane.b32.xlu0 %v189, 64
  %v191 = vpop.permute.xlu0 %190
  %v193 = vsel %vm51, %v191, 0
  %195 = vmatpush.bf16.msra.mxu0 0
  %196 = vmatpush.bf16.msra.mxu0 0
  %197 = vmatpush.bf16.msra.mxu0 0
  %198 = vmatpush.bf16.msra.mxu0 0
  %199 = vmatpush.bf16.msra.mxu0 0
  %200 = vmatpush.bf16.msra.mxu0 0
  %201 = vmatpush.bf16.msra.mxu0 %v48
  %202 = vmatpush.bf16.msra.mxu0 %v47
  %203 = vmatmul.bf16.gmra.mxu0 %v193
  %v204 = vpop.f32.mrf.mxu0
  %v205 = vadd.f32 0.0, %v204
  %v206 = vpop.f32.mrf.mxu0
  %207 = vdwg.mxu0
  %v208 = vadd.f32 %v187, %v205
  %v209 = vxor.u32 %v208, 2147483648
  %v210 = vmul.f32 %v209, 1.442695
  %v211 = vpow.pop %v210
  %v212 = vadd.f32 %v211, 1.0
  %v213 = vrcp.pop %v212
  %v214 = vmul.f32 %v212, %v213
  %v215 = vsub.f32 1.0, %v214
  %v216 = vmul.f32 %v213, %v215
  %v217 = vadd.f32 %v213, %v216
  %vm218 = vweird.f32 %v212
  %vm219 = vweird.f32 %v213
  %vm220 = vmor %vm218, %vm219
  %v221 = vsel %vm220, %v213, %v217
  %v222 = vand.u32 2147483647, %v212
  %vm223 = vcmp.eq.f32.partialorder %v222, 8.507059e+37
  %v224 = vand.u32 %v212, 2147483648
  %v225 = vor.u32 1.1754944e-38, %v224
  %v226 = vsel %vm223, %v225, %v221
  %v227 = vmul.f32 1.0, %v226
  %v228 = vtanh.pop %v208
  %v229 = vmul.f32 %v227, %v171
  %231 = vrot.lane.b32.xlu0 %v228, 32
  %v232 = vpop.permute.xlu0 %231
  %v234 = vmul.f32 %v227, %v232
  %236 = vrot.lane.b32.xlu0 %v234, 32
  %v237 = vpop.permute.xlu0 %236
  %v239 = vadd.f32 %v229, %v237
  %v240 = vtanh.pop %v239
  %242 = vrot.lane.b32.xlu0 %v240, 32
  %v243 = vpop.permute.xlu0 %242
  %v245 = vmul.f32 %v227, %v243
  %v246 = vpack.c.bf16 %v245, %v245
  %248 = vrot.lane.b32.xlu0 %v246, 64
  %v249 = vpop.permute.xlu0 %248
  %s251 = scalar_lea.vmem %s4, 8
  %252 = vst.msk [vmem:[%s251] sm:$0xf] %vm115, %v249
  %s253 = scalar_lea.vmem %s0, 12
  %v254 = vld [vmem:[%s253] sm:$0xf]
  %v255 = vunpack.c.l.bf16 %v254
  %v256 = vunpack.c.l.b16 %v246
  %v257 = vpack.c.b16 %v256, %v256
  %258 = vrot.lane.b32.xlu0 %v257, 64
  %v259 = vpop.permute.xlu0 %258
  %v261 = vsel %vm51, %v259, 0
  %263 = vmatpush.bf16.msra.mxu0 0
  %264 = vmatpush.bf16.msra.mxu0 0
  %265 = vmatpush.bf16.msra.mxu0 0
  %266 = vmatpush.bf16.msra.mxu0 0
  %267 = vmatpush.bf16.msra.mxu0 0
  %268 = vmatpush.bf16.msra.mxu0 0
  %269 = vmatpush.bf16.msra.mxu0 %v48
  %270 = vmatpush.bf16.msra.mxu0 %v47
  %271 = vmatmul.bf16.gmra.mxu0 %v261
  %v272 = vpop.f32.mrf.mxu0
  %v273 = vadd.f32 0.0, %v272
  %v274 = vpop.f32.mrf.mxu0
  %275 = vdwg.mxu0
  %v276 = vadd.f32 %v255, %v273
  %v277 = vxor.u32 %v276, 2147483648
  %v278 = vmul.f32 %v277, 1.442695
  %v279 = vpow.pop %v278
  %v280 = vadd.f32 %v279, 1.0
  %v281 = vrcp.pop %v280
  %v282 = vmul.f32 %v280, %v281
  %v283 = vsub.f32 1.0, %v282
  %v284 = vmul.f32 %v281, %v283
  %v285 = vadd.f32 %v281, %v284
  %vm286 = vweird.f32 %v280
  %vm287 = vweird.f32 %v281
  %vm288 = vmor %vm286, %vm287
  %v289 = vsel %vm288, %v281, %v285
  %v290 = vand.u32 2147483647, %v280
  %vm291 = vcmp.eq.f32.partialorder %v290, 8.507059e+37
  %v292 = vand.u32 %v280, 2147483648
  %v293 = vor.u32 1.1754944e-38, %v292
  %v294 = vsel %vm291, %v293, %v289
  %v295 = vmul.f32 1.0, %v294
  %v296 = vtanh.pop %v276
  %v297 = vmul.f32 %v295, %v239
  %299 = vrot.lane.b32.xlu0 %v296, 32
  %v300 = vpop.permute.xlu0 %299
  %v302 = vmul.f32 %v295, %v300
  %304 = vrot.lane.b32.xlu0 %v302, 32
  %v305 = vpop.permute.xlu0 %304
  %v307 = vadd.f32 %v297, %v305
  %v308 = vtanh.pop %v307
  %310 = vrot.lane.b32.xlu0 %v308, 32
  %v311 = vpop.permute.xlu0 %310
  %v313 = vmul.f32 %v295, %v311
  %v314 = vpack.c.bf16 %v313, %v313
  %316 = vrot.lane.b32.xlu0 %v314, 64
  %v317 = vpop.permute.xlu0 %316
  %s319 = scalar_lea.vmem %s4, 12
  %320 = vst.msk [vmem:[%s319] sm:$0xf] %vm115, %v317
  %s321 = scalar_lea.vmem %s0, 16
  %v322 = vld [vmem:[%s321] sm:$0xf]
  %v323 = vunpack.c.l.bf16 %v322
  %v324 = vunpack.c.l.b16 %v314
  %v325 = vpack.c.b16 %v324, %v324
  %326 = vrot.lane.b32.xlu0 %v325, 64
  %v327 = vpop.permute.xlu0 %326
  %v329 = vsel %vm51, %v327, 0
  %331 = vmatpush.bf16.msra.mxu0 0
  %332 = vmatpush.bf16.msra.mxu0 0
  %333 = vmatpush.bf16.msra.mxu0 0
  %334 = vmatpush.bf16.msra.mxu0 0
  %335 = vmatpush.bf16.msra.mxu0 0
  %336 = vmatpush.bf16.msra.mxu0 0
  %337 = vmatpush.bf16.msra.mxu0 %v48
  %338 = vmatpush.bf16.msra.mxu0 %v47
  %339 = vmatmul.bf16.gmra.mxu0 %v329
  %v340 = vpop.f32.mrf.mxu0
  %v341 = vadd.f32 0.0, %v340
  %v342 = vpop.f32.mrf.mxu0
  %343 = vdwg.mxu0
  %v344 = vadd.f32 %v323, %v341
  %v345 = vxor.u32 %v344, 2147483648
  %v346 = vmul.f32 %v345, 1.442695
  %v347 = vpow.pop %v346
  %v348 = vadd.f32 %v347, 1.0
  %v349 = vrcp.pop %v348
  %v350 = vmul.f32 %v348, %v349
  %v351 = vsub.f32 1.0, %v350
  %v352 = vmul.f32 %v349, %v351
  %v353 = vadd.f32 %v349, %v352
  %vm354 = vweird.f32 %v348
  %vm355 = vweird.f32 %v349
  %vm356 = vmor %vm354, %vm355
  %v357 = vsel %vm356, %v349, %v353
  %v358 = vand.u32 2147483647, %v348
  %vm359 = vcmp.eq.f32.partialorder %v358, 8.507059e+37
  %v360 = vand.u32 %v348, 2147483648
  %v361 = vor.u32 1.1754944e-38, %v360
  %v362 = vsel %vm359, %v361, %v357
  %v363 = vmul.f32 1.0, %v362
  %v364 = vtanh.pop %v344
  %v365 = vmul.f32 %v363, %v307
  %367 = vrot.lane.b32.xlu0 %v364, 32
  %v368 = vpop.permute.xlu0 %367
  %v370 = vmul.f32 %v363, %v368
  %372 = vrot.lane.b32.xlu0 %v370, 32
  %v373 = vpop.permute.xlu0 %372
  %v375 = vadd.f32 %v365, %v373
  %v376 = vtanh.pop %v375
  %378 = vrot.lane.b32.xlu0 %v376, 32
  %v379 = vpop.permute.xlu0 %378
  %v381 = vmul.f32 %v363, %v379
  %v382 = vpack.c.bf16 %v381, %v381
  %384 = vrot.lane.b32.xlu0 %v382, 64
  %v385 = vpop.permute.xlu0 %384
  %s387 = scalar_lea.vmem %s4, 16
  %388 = vst.msk [vmem:[%s387] sm:$0xf] %vm115, %v385
  %s389 = scalar_lea.vmem %s0, 20
  %v390 = vld [vmem:[%s389] sm:$0xf]
  %v391 = vunpack.c.l.bf16 %v390
  %v392 = vunpack.c.l.b16 %v382
  %v393 = vpack.c.b16 %v392, %v392
  %394 = vrot.lane.b32.xlu0 %v393, 64
  %v395 = vpop.permute.xlu0 %394
  %v397 = vsel %vm51, %v395, 0
  %399 = vmatpush.bf16.msra.mxu0 0
  %400 = vmatpush.bf16.msra.mxu0 0
  %401 = vmatpush.bf16.msra.mxu0 0
  %402 = vmatpush.bf16.msra.mxu0 0
  %403 = vmatpush.bf16.msra.mxu0 0
  %404 = vmatpush.bf16.msra.mxu0 0
  %405 = vmatpush.bf16.msra.mxu0 %v48
  %406 = vmatpush.bf16.msra.mxu0 %v47
  %407 = vmatmul.bf16.gmra.mxu0 %v397
  %v408 = vpop.f32.mrf.mxu0
  %v409 = vadd.f32 0.0, %v408
  %v410 = vpop.f32.mrf.mxu0
  %411 = vdwg.mxu0
  %v412 = vadd.f32 %v391, %v409
  %v413 = vxor.u32 %v412, 2147483648
  %v414 = vmul.f32 %v413, 1.442695
  %v415 = vpow.pop %v414
  %v416 = vadd.f32 %v415, 1.0
  %v417 = vrcp.pop %v416
  %v418 = vmul.f32 %v416, %v417
  %v419 = vsub.f32 1.0, %v418
  %v420 = vmul.f32 %v417, %v419
  %v421 = vadd.f32 %v417, %v420
  %vm422 = vweird.f32 %v416
  %vm423 = vweird.f32 %v417
  %vm424 = vmor %vm422, %vm423
  %v425 = vsel %vm424, %v417, %v421
  %v426 = vand.u32 2147483647, %v416
  %vm427 = vcmp.eq.f32.partialorder %v426, 8.507059e+37
  %v428 = vand.u32 %v416, 2147483648
  %v429 = vor.u32 1.1754944e-38, %v428
  %v430 = vsel %vm427, %v429, %v425
  %v431 = vmul.f32 1.0, %v430
  %v432 = vtanh.pop %v412
  %v433 = vmul.f32 %v431, %v375
  %435 = vrot.lane.b32.xlu0 %v432, 32
  %v436 = vpop.permute.xlu0 %435
  %v438 = vmul.f32 %v431, %v436
  %440 = vrot.lane.b32.xlu0 %v438, 32
  %v441 = vpop.permute.xlu0 %440
  %v443 = vadd.f32 %v433, %v441
  %v444 = vtanh.pop %v443
  %446 = vrot.lane.b32.xlu0 %v444, 32
  %v447 = vpop.permute.xlu0 %446
  %v449 = vmul.f32 %v431, %v447
  %v450 = vpack.c.bf16 %v449, %v449
  %452 = vrot.lane.b32.xlu0 %v450, 64
  %v453 = vpop.permute.xlu0 %452
  %s455 = scalar_lea.vmem %s4, 20
  %456 = vst.msk [vmem:[%s455] sm:$0xf] %vm115, %v453
  %s457 = scalar_lea.vmem %s0, 24
  %v458 = vld [vmem:[%s457] sm:$0xf]
  %v459 = vunpack.c.l.bf16 %v458
  %v460 = vunpack.c.l.b16 %v450
  %v461 = vpack.c.b16 %v460, %v460
  %462 = vrot.lane.b32.xlu0 %v461, 64
  %v463 = vpop.permute.xlu0 %462
  %v465 = vsel %vm51, %v463, 0
  %467 = vmatpush.bf16.msra.mxu0 0
  %468 = vmatpush.bf16.msra.mxu0 0
  %469 = vmatpush.bf16.msra.mxu0 0
  %470 = vmatpush.bf16.msra.mxu0 0
  %471 = vmatpush.bf16.msra.mxu0 0
  %472 = vmatpush.bf16.msra.mxu0 0
  %473 = vmatpush.bf16.msra.mxu0 %v48
  %474 = vmatpush.bf16.msra.mxu0 %v47
  %475 = vmatmul.bf16.gmra.mxu0 %v465
  %v476 = vpop.f32.mrf.mxu0
  %v477 = vadd.f32 0.0, %v476
  %v478 = vpop.f32.mrf.mxu0
  %479 = vdwg.mxu0
  %v480 = vadd.f32 %v459, %v477
  %v481 = vxor.u32 %v480, 2147483648
  %v482 = vmul.f32 %v481, 1.442695
  %v483 = vpow.pop %v482
  %v484 = vadd.f32 %v483, 1.0
  %v485 = vrcp.pop %v484
  %v486 = vmul.f32 %v484, %v485
  %v487 = vsub.f32 1.0, %v486
  %v488 = vmul.f32 %v485, %v487
  %v489 = vadd.f32 %v485, %v488
  %vm490 = vweird.f32 %v484
  %vm491 = vweird.f32 %v485
  %vm492 = vmor %vm490, %vm491
  %v493 = vsel %vm492, %v485, %v489
  %v494 = vand.u32 2147483647, %v484
  %vm495 = vcmp.eq.f32.partialorder %v494, 8.507059e+37
  %v496 = vand.u32 %v484, 2147483648
  %v497 = vor.u32 1.1754944e-38, %v496
  %v498 = vsel %vm495, %v497, %v493
  %v499 = vmul.f32 1.0, %v498
  %v500 = vtanh.pop %v480
  %v501 = vmul.f32 %v499, %v443
  %503 = vrot.lane.b32.xlu0 %v500, 32
  %v504 = vpop.permute.xlu0 %503
  %v506 = vmul.f32 %v499, %v504
  %508 = vrot.lane.b32.xlu0 %v506, 32
  %v509 = vpop.permute.xlu0 %508
  %v511 = vadd.f32 %v501, %v509
  %v512 = vtanh.pop %v511
  %514 = vrot.lane.b32.xlu0 %v512, 32
  %v515 = vpop.permute.xlu0 %514
  %v517 = vmul.f32 %v499, %v515
  %v518 = vpack.c.bf16 %v517, %v517
  %520 = vrot.lane.b32.xlu0 %v518, 64
  %v521 = vpop.permute.xlu0 %520
  %s523 = scalar_lea.vmem %s4, 24
  %524 = vst.msk [vmem:[%s523] sm:$0xf] %vm115, %v521
  %s525 = scalar_lea.vmem %s0, 28
  %v526 = vld [vmem:[%s525] sm:$0xf]
  %v527 = vunpack.c.l.bf16 %v526
  %v528 = vunpack.c.l.b16 %v518
  %v529 = vpack.c.b16 %v528, %v528
  %530 = vrot.lane.b32.xlu0 %v529, 64
  %v531 = vpop.permute.xlu0 %530
  %v533 = vsel %vm51, %v531, 0
  %535 = vmatpush.bf16.msra.mxu0 0
  %536 = vmatpush.bf16.msra.mxu0 0
  %537 = vmatpush.bf16.msra.mxu0 0
  %538 = vmatpush.bf16.msra.mxu0 0
  %539 = vmatpush.bf16.msra.mxu0 0
  %540 = vmatpush.bf16.msra.mxu0 0
  %541 = vmatpush.bf16.msra.mxu0 %v48
  %542 = vmatpush.bf16.msra.mxu0 %v47
  %543 = vmatmul.bf16.gmra.mxu0 %v533
  %v544 = vpop.f32.mrf.mxu0
  %v545 = vadd.f32 0.0, %v544
  %v546 = vpop.f32.mrf.mxu0
  %547 = vdwg.mxu0
  %v548 = vadd.f32 %v527, %v545
  %v549 = vxor.u32 %v548, 2147483648
  %v550 = vmul.f32 %v549, 1.442695
  %v551 = vpow.pop %v550
  %v552 = vadd.f32 %v551, 1.0
  %v553 = vrcp.pop %v552
  %v554 = vmul.f32 %v552, %v553
  %v555 = vsub.f32 1.0, %v554
  %v556 = vmul.f32 %v553, %v555
  %v557 = vadd.f32 %v553, %v556
  %vm558 = vweird.f32 %v552
  %vm559 = vweird.f32 %v553
  %vm560 = vmor %vm558, %vm559
  %v561 = vsel %vm560, %v553, %v557
  %v562 = vand.u32 2147483647, %v552
  %vm563 = vcmp.eq.f32.partialorder %v562, 8.507059e+37
  %v564 = vand.u32 %v552, 2147483648
  %v565 = vor.u32 1.1754944e-38, %v564
  %v566 = vsel %vm563, %v565, %v561
  %v567 = vmul.f32 1.0, %v566
  %v568 = vtanh.pop %v548
  %v569 = vmul.f32 %v567, %v511
  %571 = vrot.lane.b32.xlu0 %v568, 32
  %v572 = vpop.permute.xlu0 %571
  %v574 = vmul.f32 %v567, %v572
  %576 = vrot.lane.b32.xlu0 %v574, 32
  %v577 = vpop.permute.xlu0 %576
  %v579 = vadd.f32 %v569, %v577
  %v580 = vtanh.pop %v579
  %582 = vrot.lane.b32.xlu0 %v580, 32
  %v583 = vpop.permute.xlu0 %582
  %v585 = vmul.f32 %v567, %v583
  %v586 = vpack.c.bf16 %v585, %v585
  %588 = vrot.lane.b32.xlu0 %v586, 64
  %v589 = vpop.permute.xlu0 %588
  %s591 = scalar_lea.vmem %s4, 28
  %592 = vst.msk [vmem:[%s591] sm:$0xf] %vm115, %v589
  %594 = vrot.lane.b32.xlu0 %v585, 64
  %v595 = vpop.permute.xlu0 %594
  %597 = vst.msk [vmem:[%s5] sm:$0xff] %vm51, %v595
  %599 = vrot.lane.b32.xlu0 %v579, 96
  %v600 = vpop.permute.xlu0 %599
  %602 = vst.msk [vmem:[%s6] sm:$0xff] %vm51, %v600
  // Predicated region
  $region22: #{lstm_model_forward.6} parent=0 // pred_check
    _
  $region23: #{lstm_model_forward.6} parent=0 // pred_check_branch
    %604 = sbr.rel (0) target = $region25
  $region24: #{lstm_model_forward.6} parent=0 // pred_region
    _
  $region25: #{lstm_model_forward.6} parent=0 // pred_fallthru
    _
  // Predicated region
  $region26: #{lstm_model_forward.6} parent=0 // pred_check
    _
  $region27: #{lstm_model_forward.6} parent=0 // pred_check_branch
    %606 = sbr.rel (0) target = $region29
  $region28: #{lstm_model_forward.6} parent=0 // pred_region
    _
  $region29: #{lstm_model_forward.6} parent=0 // pred_fallthru
    _
  // Predicated region
  $region30: #{lstm_model_forward.6} parent=0 // pred_check
    _
  $region31: #{lstm_model_forward.6} parent=0 // pred_check_branch
    %608 = sbr.rel (0) target = $region33
  $region32: #{lstm_model_forward.6} parent=0 // pred_region
    _
  $region33: #{lstm_model_forward.6} parent=0 // pred_fallthru
    _
  // Predicated region
  $region34: #{lstm_model_forward.6} parent=0 // pred_check
    _
  $region35: #{lstm_model_forward.6} parent=0 // pred_check_branch
    %610 = sbr.rel (0) target = $region37
  $region36: #{lstm_model_forward.6} parent=0 // pred_region
    _
  $region37: #{lstm_model_forward.6} parent=0 // pred_fallthru
    _
  // Predicated region
  $region38: #{lstm_model_forward.6} parent=0 // pred_check
    _
  $region39: #{lstm_model_forward.6} parent=0 // pred_check_branch
    %612 = sbr.rel (0) target = $region41
  $region40: #{lstm_model_forward.6} parent=0 // pred_region
    _
  $region41: #{lstm_model_forward.6} parent=0 // pred_fallthru
    _
  // Predicated region
  $region42: #{lstm_model_forward.6} parent=0 // pred_check
    _
  $region43: #{lstm_model_forward.6} parent=0 // pred_check_branch
    %614 = sbr.rel (0) target = $region45
  $region44: #{lstm_model_forward.6} parent=0 // pred_region
    _
  $region45: #{lstm_model_forward.6} parent=0 // pred_fallthru
    _

</llo_original>
